<compile_context>
chip_gen: v5e
topology: v5e:2x2
jax: 0.10.0
libtpu: 0.0.40
codegen_flags: <defaults>
</compile_context>

<pallas_src>
import functools

import jax
import jax.numpy as jnp
from jax.experimental import pallas as pl
from jax.experimental.pallas import tpu as pltpu

# ----------------------------- model dims (small) -----------------------------
INPUT_SIZE = 5
HIDDEN_SIZE = 32          # small stand-in for the module's hidden_size (4H = 128 lanes)
NUM_LAYERS = 2
OUTPUT_SIZE = 5
BATCH = 2
SEQ = 8


# ----------------------------- Pallas kernel ----------------------------------
def _gru_fc_kernel(x_ref,                 # (B*T, I)  row order: b*T + t (batch_first reshape)
                   wx0_ref, bx0_ref,      # layer-0 input proj, packed (I, 4H), (1, 4H)
                   wh0_ref,               # layer-0 hidden proj, packed (H, 4H)
                   w1_ref, b1_ref,        # layer-1 fused [h0|h1] proj, packed (2H, 4H), (1, 4H)
                   wfc_ref, bfc_ref,      # final linear (H, O), (1, O)
                   out_ref,               # (B, O)
                   *, T, B, H):
    H2, H3, H4 = 2 * H, 3 * H, 4 * H

    # Load tiny parameters once into vregs.
    wh0 = wh0_ref[...]
    w1 = w1_ref[...]
    # Hoist the bias broadcast out of the loop (JAX will not CSE it inside).
    b1 = jnp.broadcast_to(b1_ref[...], (B, H4))

    # Hoisted layer-0 input projection for all (b, t) at once; biases (both the
    # ih and hh r/z biases plus the split n biases) are pre-folded into bx0.
    gx0_all = (jnp.dot(x_ref[...], wx0_ref[...],
                       preferred_element_type=jnp.float32) + bx0_ref[...])   # (B*T, 4H)

    h0 = jnp.zeros((B, H), jnp.float32)
    h1 = jnp.zeros((B, H), jnp.float32)

    # Static unroll over the short, serial recurrence (T = 8).
    for t in range(T):
        # Gather this timestep's precomputed layer-0 gates: rows b*T + t (static).
        gx0_t = jnp.concatenate(
            [gx0_all[b * T + t: b * T + t + 1, :] for b in range(B)], axis=0)  # (B, 4H)

        # ---- layer 0: single (B,H)x(H,4H) matmul per step ----
        pre0 = gx0_t + jnp.dot(h0, wh0, preferred_element_type=jnp.float32)
        r0 = jax.nn.sigmoid(pre0[:, 0:H])
        z0 = jax.nn.sigmoid(pre0[:, H:H2])
        n0 = jnp.tanh(pre0[:, H2:H3] + r0 * pre0[:, H3:H4])
        h0 = (1.0 - z0) * n0 + z0 * h0

        # ---- layer 1: fused ih/hh matmul, (B,2H)x(2H,4H) ----
        lhs1 = jnp.concatenate([h0, h1], axis=1)                               # (B, 2H)
        g1 = jnp.dot(lhs1, w1, preferred_element_type=jnp.float32) + b1
        r1 = jax.nn.sigmoid(g1[:, 0:H])
        z1 = jax.nn.sigmoid(g1[:, H:H2])
        n1 = jnp.tanh(g1[:, H2:H3] + r1 * g1[:, H3:H4])
        h1 = (1.0 - z1) * n1 + z1 * h1

    # Final Linear on the last timestep's top-layer hidden state.
    out_ref[...] = (jnp.dot(h1, wfc_ref[...], preferred_element_type=jnp.float32)
                    + bfc_ref[...]).astype(out_ref.dtype)


# ----------------------------- wrapper -----------------------------------------
def stock_predictor_gru(x, packed):
    """x: (B, T, I) f32 (batch_first, like PyTorch). Returns (B, O) f32."""
    B, T, I = x.shape
    H, O = HIDDEN_SIZE, OUTPUT_SIZE

    # Free reshape (no transpose): row b*T + t of the 2D slab == x[b, t, :].
    x2d = x.reshape(B * T, I)

    kernel = functools.partial(_gru_fc_kernel, T=T, B=B, H=H)
    vmem = pl.BlockSpec(memory_space=pltpu.MemorySpace.VMEM)

    args = (x2d,
            packed["w_x0"], packed["b_x0"], packed["w_h0"],
            packed["w_1"], packed["b_1"],
            packed["w_fc"], packed["b_fc"])

    return pl.pallas_call(
        kernel,
        out_shape=jax.ShapeDtypeStruct((B, O), jnp.float32),
        in_specs=[vmem] * len(args),
        out_specs=vmem,
    )(*args)


# ----------------------------- parameter handling ------------------------------
def init_params(key):
    """PyTorch-style GRU params, stored transposed (in_dim, 3H), gate order [r|z|n]."""
    H, I, O = HIDDEN_SIZE, INPUT_SIZE, OUTPUT_SIZE
    bound = 1.0 / jnp.sqrt(jnp.float32(H))
    keys = jax.random.split(key, 10)

    def u(k, shape):
        return jax.random.uniform(k, shape, jnp.float32, -bound, bound)

    return {
        "w_ih_l0": u(keys[0], (I, 3 * H)),
        "w_hh_l0": u(keys[1], (H, 3 * H)),
        "b_ih_l0": u(keys[2], (1, 3 * H)),
        "b_hh_l0": u(keys[3], (1, 3 * H)),
        "w_ih_l1": u(keys[4], (H, 3 * H)),
        "w_hh_l1": u(keys[5], (H, 3 * H)),
        "b_ih_l1": u(keys[6], (1, 3 * H)),
        "b_hh_l1": u(keys[7], (1, 3 * H)),
        "w_fc": u(keys[8], (H, O)),
        "b_fc": u(keys[9], (1, O)),
    }


def pack_params(p):
    """Repack PyTorch-style per-gate weights into the fused 4H-wide layout
    [r | z | n_x | n_h] used by the kernel. Done once, outside the hot path."""
    H, I = HIDDEN_SIZE, INPUT_SIZE
    H2, H3 = 2 * H, 3 * H
    zI = jnp.zeros((I, H), jnp.float32)
    zH = jnp.zeros((H, H), jnp.float32)

    wih0, whh0 = p["w_ih_l0"], p["w_hh_l0"]
    wih1, whh1 = p["w_ih_l1"], p["w_hh_l1"]
    bih0, bhh0 = p["b_ih_l0"], p["b_hh_l0"]
    bih1, bhh1 = p["b_ih_l1"], p["b_hh_l1"]

    # layer-0 input projection (hoisted): columns [r_x | z_x | n_x | 0], bias fully folded.
    w_x0 = jnp.concatenate([wih0[:, 0:H], wih0[:, H:H2], wih0[:, H2:H3], zI], axis=1)
    b_x0 = jnp.concatenate([bih0[:, 0:H] + bhh0[:, 0:H],
                            bih0[:, H:H2] + bhh0[:, H:H2],
                            bih0[:, H2:H3],
                            bhh0[:, H2:H3]], axis=1)
    # layer-0 hidden projection: columns [r_h | z_h | 0 | n_h].
    w_h0 = jnp.concatenate([whh0[:, 0:H], whh0[:, H:H2], zH, whh0[:, H2:H3]], axis=1)

    # layer-1 fused projection: LHS = [h0 | h1]  ->  rows [ih-part ; hh-part].
    w1_top = jnp.concatenate([wih1[:, 0:H], wih1[:, H:H2], wih1[:, H2:H3], zH], axis=1)
    w1_bot = jnp.concatenate([whh1[:, 0:H], whh1[:, H:H2], zH, whh1[:, H2:H3]], axis=1)
    w_1 = jnp.concatenate([w1_top, w1_bot], axis=0)
    b_1 = jnp.concatenate([bih1[:, 0:H] + bhh1[:, 0:H],
                           bih1[:, H:H2] + bhh1[:, H:H2],
                           bih1[:, H2:H3],
                           bhh1[:, H2:H3]], axis=1)

    return {"w_x0": w_x0, "b_x0": b_x0, "w_h0": w_h0,
            "w_1": w_1, "b_1": b_1,
            "w_fc": p["w_fc"], "b_fc": p["b_fc"]}


# ----------------------------- pure-JAX reference -------------------------------
def _gru_cell(x_t, h_prev, w_ih, w_hh, b_ih, b_hh, H):
    gx = jnp.dot(x_t, w_ih) + b_ih
    gh = jnp.dot(h_prev, w_hh) + b_hh
    r = jax.nn.sigmoid(gx[:, 0:H] + gh[:, 0:H])
    z = jax.nn.sigmoid(gx[:, H:2 * H] + gh[:, H:2 * H])
    n = jnp.tanh(gx[:, 2 * H:3 * H] + r * gh[:, 2 * H:3 * H])
    return (1.0 - z) * n + z * h_prev


def reference_forward(x, params):
    B, T, I = x.shape
    H = HIDDEN_SIZE
    h0 = jnp.zeros((B, H), jnp.float32)
    h1 = jnp.zeros((B, H), jnp.float32)
    for t in range(T):
        x_t = x[:, t, :]
        h0 = _gru_cell(x_t, h0, params["w_ih_l0"], params["w_hh_l0"],
                       params["b_ih_l0"], params["b_hh_l0"], H)
        h1 = _gru_cell(h0, h1, params["w_ih_l1"], params["w_hh_l1"],
                       params["b_ih_l1"], params["b_hh_l1"], H)
    return jnp.dot(h1, params["w_fc"]) + params["b_fc"]


if __name__ == "__main__":
    key = jax.random.PRNGKey(0)
    k_x, k_p = jax.random.split(key)

    x = jax.random.normal(k_x, (BATCH, SEQ, INPUT_SIZE), jnp.float32)
    params = init_params(k_p)
    packed = pack_params(params)          # one-time weight repacking (outside kernel path)

    out = stock_predictor_gru(x, packed)
    out = jax.block_until_ready(out)

    ref = reference_forward(x, params)
    assert out.shape == (BATCH, OUTPUT_SIZE), out.shape
    assert jnp.allclose(out, ref, rtol=1e-4, atol=1e-4), (out, ref)

    print("KERNEL_OK")
</pallas_src>

<mosaic_0001>
module attributes {stable_mosaic.version = 11 : i64} {
  func.func @_gru_fc_kernel(%arg0: memref<16x5xf32, #tpu.memory_space<vmem>>, %arg1: memref<5x128xf32, #tpu.memory_space<vmem>>, %arg2: memref<1x128xf32, #tpu.memory_space<vmem>>, %arg3: memref<32x128xf32, #tpu.memory_space<vmem>>, %arg4: memref<64x128xf32, #tpu.memory_space<vmem>>, %arg5: memref<1x128xf32, #tpu.memory_space<vmem>>, %arg6: memref<32x5xf32, #tpu.memory_space<vmem>>, %arg7: memref<1x5xf32, #tpu.memory_space<vmem>>, %arg8: memref<2x5xf32, #tpu.memory_space<vmem>>) attributes {dimension_semantics = [], scalar_prefetch = 0 : i64, scratch_operands = 0 : i64, tpu.core_type = #tpu.core_type<tc>} {
    %c0 = arith.constant 0 : index
    %c0_0 = arith.constant 0 : index
    %0 = vector.load %arg3[%c0, %c0_0] : memref<32x128xf32, #tpu.memory_space<vmem>>, vector<32x128xf32>
    %c0_1 = arith.constant 0 : index
    %c0_2 = arith.constant 0 : index
    %1 = vector.load %arg4[%c0_1, %c0_2] : memref<64x128xf32, #tpu.memory_space<vmem>>, vector<64x128xf32>
    %c0_3 = arith.constant 0 : index
    %c0_4 = arith.constant 0 : index
    %2 = vector.load %arg5[%c0_3, %c0_4] : memref<1x128xf32, #tpu.memory_space<vmem>>, vector<1x128xf32>
    %3 = vector.shape_cast %2 : vector<1x128xf32> to vector<1x128xf32>
    %4 = vector.broadcast %3 : vector<1x128xf32> to vector<2x128xf32>
    %c0_5 = arith.constant 0 : index
    %c0_6 = arith.constant 0 : index
    %5 = vector.load %arg0[%c0_5, %c0_6] : memref<16x5xf32, #tpu.memory_space<vmem>>, vector<16x5xf32>
    %c0_7 = arith.constant 0 : index
    %c0_8 = arith.constant 0 : index
    %6 = vector.load %arg1[%c0_7, %c0_8] : memref<5x128xf32, #tpu.memory_space<vmem>>, vector<5x128xf32>
    %cst = arith.constant dense<0.000000e+00> : vector<16x128xf32>
    %7 = tpu.matmul %5, %6, %cst {dimension_numbers = #tpu.dot_dimension_numbers<[1], [0], [0], [1], [0, 0, 1, 1], [], []>} : vector<16x5xf32>, vector<5x128xf32>, vector<16x128xf32> -> vector<16x128xf32>
    %c0_9 = arith.constant 0 : index
    %c0_10 = arith.constant 0 : index
    %8 = vector.load %arg2[%c0_9, %c0_10] : memref<1x128xf32, #tpu.memory_space<vmem>>, vector<1x128xf32>
    %9 = vector.broadcast %8 : vector<1x128xf32> to vector<16x128xf32>
    %10 = arith.addf %7, %9 : vector<16x128xf32>
    %cst_11 = arith.constant 0.000000e+00 : f32
    %11 = vector.broadcast %cst_11 : f32 to vector<2x32xf32>
    %cst_12 = arith.constant 0.000000e+00 : f32
    %12 = vector.broadcast %cst_12 : f32 to vector<2x32xf32>
    %13 = vector.extract_strided_slice %10 {offsets = [0, 0], sizes = [1, 128], strides = [1, 1]} : vector<16x128xf32> to vector<1x128xf32>
    %14 = vector.extract_strided_slice %10 {offsets = [8, 0], sizes = [1, 128], strides = [1, 1]} : vector<16x128xf32> to vector<1x128xf32>
    %15 = tpu.concatenate %13, %14 in 0 : vector<1x128xf32>, vector<1x128xf32> -> vector<2x128xf32>
    %cst_13 = arith.constant dense<0.000000e+00> : vector<2x128xf32>
    %16 = tpu.matmul %11, %0, %cst_13 {dimension_numbers = #tpu.dot_dimension_numbers<[1], [0], [0], [1], [0, 0, 1, 1], [], []>} : vector<2x32xf32>, vector<32x128xf32>, vector<2x128xf32> -> vector<2x128xf32>
    %17 = arith.addf %15, %16 : vector<2x128xf32>
    %18 = vector.extract_strided_slice %17 {offsets = [0, 0], sizes = [2, 32], strides = [1, 1]} : vector<2x128xf32> to vector<2x32xf32>
    %19 = arith.negf %18 : vector<2x32xf32>
    %20 = math.exp %19 : vector<2x32xf32>
    %cst_14 = arith.constant 1.000000e+00 : f32
    %21 = vector.broadcast %cst_14 : f32 to vector<2x32xf32>
    %22 = arith.addf %21, %20 : vector<2x32xf32>
    %23 = arith.divf %21, %22 : vector<2x32xf32>
    %24 = vector.extract_strided_slice %17 {offsets = [0, 32], sizes = [2, 32], strides = [1, 1]} : vector<2x128xf32> to vector<2x32xf32>
    %25 = arith.negf %24 : vector<2x32xf32>
    %26 = math.exp %25 : vector<2x32xf32>
    %cst_15 = arith.constant 1.000000e+00 : f32
    %27 = vector.broadcast %cst_15 : f32 to vector<2x32xf32>
    %28 = arith.addf %27, %26 : vector<2x32xf32>
    %29 = arith.divf %27, %28 : vector<2x32xf32>
    %30 = vector.extract_strided_slice %17 {offsets = [0, 64], sizes = [2, 32], strides = [1, 1]} : vector<2x128xf32> to vector<2x32xf32>
    %31 = vector.extract_strided_slice %17 {offsets = [0, 96], sizes = [2, 32], strides = [1, 1]} : vector<2x128xf32> to vector<2x32xf32>
    %32 = arith.mulf %23, %31 : vector<2x32xf32>
    %33 = arith.addf %30, %32 : vector<2x32xf32>
    %34 = math.tanh %33 : vector<2x32xf32>
    %cst_16 = arith.constant 1.000000e+00 : f32
    %35 = vector.broadcast %cst_16 : f32 to vector<2x32xf32>
    %36 = arith.subf %35, %29 : vector<2x32xf32>
    %37 = arith.mulf %36, %34 : vector<2x32xf32>
    %38 = arith.mulf %29, %11 : vector<2x32xf32>
    %39 = arith.addf %37, %38 : vector<2x32xf32>
    %40 = tpu.concatenate %39, %12 in 1 : vector<2x32xf32>, vector<2x32xf32> -> vector<2x64xf32>
    %cst_17 = arith.constant dense<0.000000e+00> : vector<2x128xf32>
    %41 = tpu.matmul %40, %1, %cst_17 {dimension_numbers = #tpu.dot_dimension_numbers<[1], [0], [0], [1], [0, 0, 1, 1], [], []>} : vector<2x64xf32>, vector<64x128xf32>, vector<2x128xf32> -> vector<2x128xf32>
    %42 = arith.addf %41, %4 : vector<2x128xf32>
    %43 = vector.extract_strided_slice %42 {offsets = [0, 0], sizes = [2, 32], strides = [1, 1]} : vector<2x128xf32> to vector<2x32xf32>
    %44 = arith.negf %43 : vector<2x32xf32>
    %45 = math.exp %44 : vector<2x32xf32>
    %cst_18 = arith.constant 1.000000e+00 : f32
    %46 = vector.broadcast %cst_18 : f32 to vector<2x32xf32>
    %47 = arith.addf %46, %45 : vector<2x32xf32>
    %48 = arith.divf %46, %47 : vector<2x32xf32>
    %49 = vector.extract_strided_slice %42 {offsets = [0, 32], sizes = [2, 32], strides = [1, 1]} : vector<2x128xf32> to vector<2x32xf32>
    %50 = arith.negf %49 : vector<2x32xf32>
    %51 = math.exp %50 : vector<2x32xf32>
    %cst_19 = arith.constant 1.000000e+00 : f32
    %52 = vector.broadcast %cst_19 : f32 to vector<2x32xf32>
    %53 = arith.addf %52, %51 : vector<2x32xf32>
    %54 = arith.divf %52, %53 : vector<2x32xf32>
    %55 = vector.extract_strided_slice %42 {offsets = [0, 64], sizes = [2, 32], strides = [1, 1]} : vector<2x128xf32> to vector<2x32xf32>
    %56 = vector.extract_strided_slice %42 {offsets = [0, 96], sizes = [2, 32], strides = [1, 1]} : vector<2x128xf32> to vector<2x32xf32>
    %57 = arith.mulf %48, %56 : vector<2x32xf32>
    %58 = arith.addf %55, %57 : vector<2x32xf32>
    %59 = math.tanh %58 : vector<2x32xf32>
    %cst_20 = arith.constant 1.000000e+00 : f32
    %60 = vector.broadcast %cst_20 : f32 to vector<2x32xf32>
    %61 = arith.subf %60, %54 : vector<2x32xf32>
    %62 = arith.mulf %61, %59 : vector<2x32xf32>
    %63 = arith.mulf %54, %12 : vector<2x32xf32>
    %64 = arith.addf %62, %63 : vector<2x32xf32>
    %65 = vector.extract_strided_slice %10 {offsets = [1, 0], sizes = [1, 128], strides = [1, 1]} : vector<16x128xf32> to vector<1x128xf32>
    %66 = vector.extract_strided_slice %10 {offsets = [9, 0], sizes = [1, 128], strides = [1, 1]} : vector<16x128xf32> to vector<1x128xf32>
    %67 = tpu.concatenate %65, %66 in 0 : vector<1x128xf32>, vector<1x128xf32> -> vector<2x128xf32>
    %cst_21 = arith.constant dense<0.000000e+00> : vector<2x128xf32>
    %68 = tpu.matmul %39, %0, %cst_21 {dimension_numbers = #tpu.dot_dimension_numbers<[1], [0], [0], [1], [0, 0, 1, 1], [], []>} : vector<2x32xf32>, vector<32x128xf32>, vector<2x128xf32> -> vector<2x128xf32>
    %69 = arith.addf %67, %68 : vector<2x128xf32>
    %70 = vector.extract_strided_slice %69 {offsets = [0, 0], sizes = [2, 32], strides = [1, 1]} : vector<2x128xf32> to vector<2x32xf32>
    %71 = arith.negf %70 : vector<2x32xf32>
    %72 = math.exp %71 : vector<2x32xf32>
    %cst_22 = arith.constant 1.000000e+00 : f32
    %73 = vector.broadcast %cst_22 : f32 to vector<2x32xf32>
    %74 = arith.addf %73, %72 : vector<2x32xf32>
    %75 = arith.divf %73, %74 : vector<2x32xf32>
    %76 = vector.extract_strided_slice %69 {offsets = [0, 32], sizes = [2, 32], strides = [1, 1]} : vector<2x128xf32> to vector<2x32xf32>
    %77 = arith.negf %76 : vector<2x32xf32>
    %78 = math.exp %77 : vector<2x32xf32>
    %cst_23 = arith.constant 1.000000e+00 : f32
    %79 = vector.broadcast %cst_23 : f32 to vector<2x32xf32>
    %80 = arith.addf %79, %78 : vector<2x32xf32>
    %81 = arith.divf %79, %80 : vector<2x32xf32>
    %82 = vector.extract_strided_slice %69 {offsets = [0, 64], sizes = [2, 32], strides = [1, 1]} : vector<2x128xf32> to vector<2x32xf32>
    %83 = vector.extract_strided_slice %69 {offsets = [0, 96], sizes = [2, 32], strides = [1, 1]} : vector<2x128xf32> to vector<2x32xf32>
    %84 = arith.mulf %75, %83 : vector<2x32xf32>
    %85 = arith.addf %82, %84 : vector<2x32xf32>
    %86 = math.tanh %85 : vector<2x32xf32>
    %cst_24 = arith.constant 1.000000e+00 : f32
    %87 = vector.broadcast %cst_24 : f32 to vector<2x32xf32>
    %88 = arith.subf %87, %81 : vector<2x32xf32>
    %89 = arith.mulf %88, %86 : vector<2x32xf32>
    %90 = arith.mulf %81, %39 : vector<2x32xf32>
    %91 = arith.addf %89, %90 : vector<2x32xf32>
    %92 = tpu.concatenate %91, %64 in 1 : vector<2x32xf32>, vector<2x32xf32> -> vector<2x64xf32>
    %cst_25 = arith.constant dense<0.000000e+00> : vector<2x128xf32>
    %93 = tpu.matmul %92, %1, %cst_25 {dimension_numbers = #tpu.dot_dimension_numbers<[1], [0], [0], [1], [0, 0, 1, 1], [], []>} : vector<2x64xf32>, vector<64x128xf32>, vector<2x128xf32> -> vector<2x128xf32>
    %94 = arith.addf %93, %4 : vector<2x128xf32>
    %95 = vector.extract_strided_slice %94 {offsets = [0, 0], sizes = [2, 32], strides = [1, 1]} : vector<2x128xf32> to vector<2x32xf32>
    %96 = arith.negf %95 : vector<2x32xf32>
    %97 = math.exp %96 : vector<2x32xf32>
    %cst_26 = arith.constant 1.000000e+00 : f32
    %98 = vector.broadcast %cst_26 : f32 to vector<2x32xf32>
    %99 = arith.addf %98, %97 : vector<2x32xf32>
    %100 = arith.divf %98, %99 : vector<2x32xf32>
    %101 = vector.extract_strided_slice %94 {offsets = [0, 32], sizes = [2, 32], strides = [1, 1]} : vector<2x128xf32> to vector<2x32xf32>
    %102 = arith.negf %101 : vector<2x32xf32>
    %103 = math.exp %102 : vector<2x32xf32>
    %cst_27 = arith.constant 1.000000e+00 : f32
    %104 = vector.broadcast %cst_27 : f32 to vector<2x32xf32>
    %105 = arith.addf %104, %103 : vector<2x32xf32>
    %106 = arith.divf %104, %105 : vector<2x32xf32>
    %107 = vector.extract_strided_slice %94 {offsets = [0, 64], sizes = [2, 32], strides = [1, 1]} : vector<2x128xf32> to vector<2x32xf32>
    %108 = vector.extract_strided_slice %94 {offsets = [0, 96], sizes = [2, 32], strides = [1, 1]} : vector<2x128xf32> to vector<2x32xf32>
    %109 = arith.mulf %100, %108 : vector<2x32xf32>
    %110 = arith.addf %107, %109 : vector<2x32xf32>
    %111 = math.tanh %110 : vector<2x32xf32>
    %cst_28 = arith.constant 1.000000e+00 : f32
    %112 = vector.broadcast %cst_28 : f32 to vector<2x32xf32>
    %113 = arith.subf %112, %106 : vector<2x32xf32>
    %114 = arith.mulf %113, %111 : vector<2x32xf32>
    %115 = arith.mulf %106, %64 : vector<2x32xf32>
    %116 = arith.addf %114, %115 : vector<2x32xf32>
    %117 = vector.extract_strided_slice %10 {offsets = [2, 0], sizes = [1, 128], strides = [1, 1]} : vector<16x128xf32> to vector<1x128xf32>
    %118 = vector.extract_strided_slice %10 {offsets = [10, 0], sizes = [1, 128], strides = [1, 1]} : vector<16x128xf32> to vector<1x128xf32>
    %119 = tpu.concatenate %117, %118 in 0 : vector<1x128xf32>, vector<1x128xf32> -> vector<2x128xf32>
    %cst_29 = arith.constant dense<0.000000e+00> : vector<2x128xf32>
    %120 = tpu.matmul %91, %0, %cst_29 {dimension_numbers = #tpu.dot_dimension_numbers<[1], [0], [0], [1], [0, 0, 1, 1], [], []>} : vector<2x32xf32>, vector<32x128xf32>, vector<2x128xf32> -> vector<2x128xf32>
    %121 = arith.addf %119, %120 : vector<2x128xf32>
    %122 = vector.extract_strided_slice %121 {offsets = [0, 0], sizes = [2, 32], strides = [1, 1]} : vector<2x128xf32> to vector<2x32xf32>
    %123 = arith.negf %122 : vector<2x32xf32>
    %124 = math.exp %123 : vector<2x32xf32>
    %cst_30 = arith.constant 1.000000e+00 : f32
    %125 = vector.broadcast %cst_30 : f32 to vector<2x32xf32>
    %126 = arith.addf %125, %124 : vector<2x32xf32>
    %127 = arith.divf %125, %126 : vector<2x32xf32>
    %128 = vector.extract_strided_slice %121 {offsets = [0, 32], sizes = [2, 32], strides = [1, 1]} : vector<2x128xf32> to vector<2x32xf32>
    %129 = arith.negf %128 : vector<2x32xf32>
    %130 = math.exp %129 : vector<2x32xf32>
    %cst_31 = arith.constant 1.000000e+00 : f32
    %131 = vector.broadcast %cst_31 : f32 to vector<2x32xf32>
    %132 = arith.addf %131, %130 : vector<2x32xf32>
    %133 = arith.divf %131, %132 : vector<2x32xf32>
    %134 = vector.extract_strided_slice %121 {offsets = [0, 64], sizes = [2, 32], strides = [1, 1]} : vector<2x128xf32> to vector<2x32xf32>
    %135 = vector.extract_strided_slice %121 {offsets = [0, 96], sizes = [2, 32], strides = [1, 1]} : vector<2x128xf32> to vector<2x32xf32>
    %136 = arith.mulf %127, %135 : vector<2x32xf32>
    %137 = arith.addf %134, %136 : vector<2x32xf32>
    %138 = math.tanh %137 : vector<2x32xf32>
    %cst_32 = arith.constant 1.000000e+00 : f32
    %139 = vector.broadcast %cst_32 : f32 to vector<2x32xf32>
    %140 = arith.subf %139, %133 : vector<2x32xf32>
    %141 = arith.mulf %140, %138 : vector<2x32xf32>
    %142 = arith.mulf %133, %91 : vector<2x32xf32>
    %143 = arith.addf %141, %142 : vector<2x32xf32>
    %144 = tpu.concatenate %143, %116 in 1 : vector<2x32xf32>, vector<2x32xf32> -> vector<2x64xf32>
    %cst_33 = arith.constant dense<0.000000e+00> : vector<2x128xf32>
    %145 = tpu.matmul %144, %1, %cst_33 {dimension_numbers = #tpu.dot_dimension_numbers<[1], [0], [0], [1], [0, 0, 1, 1], [], []>} : vector<2x64xf32>, vector<64x128xf32>, vector<2x128xf32> -> vector<2x128xf32>
    %146 = arith.addf %145, %4 : vector<2x128xf32>
    %147 = vector.extract_strided_slice %146 {offsets = [0, 0], sizes = [2, 32], strides = [1, 1]} : vector<2x128xf32> to vector<2x32xf32>
    %148 = arith.negf %147 : vector<2x32xf32>
    %149 = math.exp %148 : vector<2x32xf32>
    %cst_34 = arith.constant 1.000000e+00 : f32
    %150 = vector.broadcast %cst_34 : f32 to vector<2x32xf32>
    %151 = arith.addf %150, %149 : vector<2x32xf32>
    %152 = arith.divf %150, %151 : vector<2x32xf32>
    %153 = vector.extract_strided_slice %146 {offsets = [0, 32], sizes = [2, 32], strides = [1, 1]} : vector<2x128xf32> to vector<2x32xf32>
    %154 = arith.negf %153 : vector<2x32xf32>
    %155 = math.exp %154 : vector<2x32xf32>
    %cst_35 = arith.constant 1.000000e+00 : f32
    %156 = vector.broadcast %cst_35 : f32 to vector<2x32xf32>
    %157 = arith.addf %156, %155 : vector<2x32xf32>
    %158 = arith.divf %156, %157 : vector<2x32xf32>
    %159 = vector.extract_strided_slice %146 {offsets = [0, 64], sizes = [2, 32], strides = [1, 1]} : vector<2x128xf32> to vector<2x32xf32>
    %160 = vector.extract_strided_slice %146 {offsets = [0, 96], sizes = [2, 32], strides = [1, 1]} : vector<2x128xf32> to vector<2x32xf32>
    %161 = arith.mulf %152, %160 : vector<2x32xf32>
    %162 = arith.addf %159, %161 : vector<2x32xf32>
    %163 = math.tanh %162 : vector<2x32xf32>
    %cst_36 = arith.constant 1.000000e+00 : f32
    %164 = vector.broadcast %cst_36 : f32 to vector<2x32xf32>
    %165 = arith.subf %164, %158 : vector<2x32xf32>
    %166 = arith.mulf %165, %163 : vector<2x32xf32>
    %167 = arith.mulf %158, %116 : vector<2x32xf32>
    %168 = arith.addf %166, %167 : vector<2x32xf32>
    %169 = vector.extract_strided_slice %10 {offsets = [3, 0], sizes = [1, 128], strides = [1, 1]} : vector<16x128xf32> to vector<1x128xf32>
    %170 = vector.extract_strided_slice %10 {offsets = [11, 0], sizes = [1, 128], strides = [1, 1]} : vector<16x128xf32> to vector<1x128xf32>
    %171 = tpu.concatenate %169, %170 in 0 : vector<1x128xf32>, vector<1x128xf32> -> vector<2x128xf32>
    %cst_37 = arith.constant dense<0.000000e+00> : vector<2x128xf32>
    %172 = tpu.matmul %143, %0, %cst_37 {dimension_numbers = #tpu.dot_dimension_numbers<[1], [0], [0], [1], [0, 0, 1, 1], [], []>} : vector<2x32xf32>, vector<32x128xf32>, vector<2x128xf32> -> vector<2x128xf32>
    %173 = arith.addf %171, %172 : vector<2x128xf32>
    %174 = vector.extract_strided_slice %173 {offsets = [0, 0], sizes = [2, 32], strides = [1, 1]} : vector<2x128xf32> to vector<2x32xf32>
    %175 = arith.negf %174 : vector<2x32xf32>
    %176 = math.exp %175 : vector<2x32xf32>
    %cst_38 = arith.constant 1.000000e+00 : f32
    %177 = vector.broadcast %cst_38 : f32 to vector<2x32xf32>
    %178 = arith.addf %177, %176 : vector<2x32xf32>
    %179 = arith.divf %177, %178 : vector<2x32xf32>
    %180 = vector.extract_strided_slice %173 {offsets = [0, 32], sizes = [2, 32], strides = [1, 1]} : vector<2x128xf32> to vector<2x32xf32>
    %181 = arith.negf %180 : vector<2x32xf32>
    %182 = math.exp %181 : vector<2x32xf32>
    %cst_39 = arith.constant 1.000000e+00 : f32
    %183 = vector.broadcast %cst_39 : f32 to vector<2x32xf32>
    %184 = arith.addf %183, %182 : vector<2x32xf32>
    %185 = arith.divf %183, %184 : vector<2x32xf32>
    %186 = vector.extract_strided_slice %173 {offsets = [0, 64], sizes = [2, 32], strides = [1, 1]} : vector<2x128xf32> to vector<2x32xf32>
    %187 = vector.extract_strided_slice %173 {offsets = [0, 96], sizes = [2, 32], strides = [1, 1]} : vector<2x128xf32> to vector<2x32xf32>
    %188 = arith.mulf %179, %187 : vector<2x32xf32>
    %189 = arith.addf %186, %188 : vector<2x32xf32>
    %190 = math.tanh %189 : vector<2x32xf32>
    %cst_40 = arith.constant 1.000000e+00 : f32
    %191 = vector.broadcast %cst_40 : f32 to vector<2x32xf32>
    %192 = arith.subf %191, %185 : vector<2x32xf32>
    %193 = arith.mulf %192, %190 : vector<2x32xf32>
    %194 = arith.mulf %185, %143 : vector<2x32xf32>
    %195 = arith.addf %193, %194 : vector<2x32xf32>
    %196 = tpu.concatenate %195, %168 in 1 : vector<2x32xf32>, vector<2x32xf32> -> vector<2x64xf32>
    %cst_41 = arith.constant dense<0.000000e+00> : vector<2x128xf32>
    %197 = tpu.matmul %196, %1, %cst_41 {dimension_numbers = #tpu.dot_dimension_numbers<[1], [0], [0], [1], [0, 0, 1, 1], [], []>} : vector<2x64xf32>, vector<64x128xf32>, vector<2x128xf32> -> vector<2x128xf32>
    %198 = arith.addf %197, %4 : vector<2x128xf32>
    %199 = vector.extract_strided_slice %198 {offsets = [0, 0], sizes = [2, 32], strides = [1, 1]} : vector<2x128xf32> to vector<2x32xf32>
    %200 = arith.negf %199 : vector<2x32xf32>
    %201 = math.exp %200 : vector<2x32xf32>
    %cst_42 = arith.constant 1.000000e+00 : f32
    %202 = vector.broadcast %cst_42 : f32 to vector<2x32xf32>
    %203 = arith.addf %202, %201 : vector<2x32xf32>
    %204 = arith.divf %202, %203 : vector<2x32xf32>
    %205 = vector.extract_strided_slice %198 {offsets = [0, 32], sizes = [2, 32], strides = [1, 1]} : vector<2x128xf32> to vector<2x32xf32>
    %206 = arith.negf %205 : vector<2x32xf32>
    %207 = math.exp %206 : vector<2x32xf32>
    %cst_43 = arith.constant 1.000000e+00 : f32
    %208 = vector.broadcast %cst_43 : f32 to vector<2x32xf32>
    %209 = arith.addf %208, %207 : vector<2x32xf32>
    %210 = arith.divf %208, %209 : vector<2x32xf32>
    %211 = vector.extract_strided_slice %198 {offsets = [0, 64], sizes = [2, 32], strides = [1, 1]} : vector<2x128xf32> to vector<2x32xf32>
    %212 = vector.extract_strided_slice %198 {offsets = [0, 96], sizes = [2, 32], strides = [1, 1]} : vector<2x128xf32> to vector<2x32xf32>
    %213 = arith.mulf %204, %212 : vector<2x32xf32>
    %214 = arith.addf %211, %213 : vector<2x32xf32>
    %215 = math.tanh %214 : vector<2x32xf32>
    %cst_44 = arith.constant 1.000000e+00 : f32
    %216 = vector.broadcast %cst_44 : f32 to vector<2x32xf32>
    %217 = arith.subf %216, %210 : vector<2x32xf32>
    %218 = arith.mulf %217, %215 : vector<2x32xf32>
    %219 = arith.mulf %210, %168 : vector<2x32xf32>
    %220 = arith.addf %218, %219 : vector<2x32xf32>
    %221 = vector.extract_strided_slice %10 {offsets = [4, 0], sizes = [1, 128], strides = [1, 1]} : vector<16x128xf32> to vector<1x128xf32>
    %222 = vector.extract_strided_slice %10 {offsets = [12, 0], sizes = [1, 128], strides = [1, 1]} : vector<16x128xf32> to vector<1x128xf32>
    %223 = tpu.concatenate %221, %222 in 0 : vector<1x128xf32>, vector<1x128xf32> -> vector<2x128xf32>
    %cst_45 = arith.constant dense<0.000000e+00> : vector<2x128xf32>
    %224 = tpu.matmul %195, %0, %cst_45 {dimension_numbers = #tpu.dot_dimension_numbers<[1], [0], [0], [1], [0, 0, 1, 1], [], []>} : vector<2x32xf32>, vector<32x128xf32>, vector<2x128xf32> -> vector<2x128xf32>
    %225 = arith.addf %223, %224 : vector<2x128xf32>
    %226 = vector.extract_strided_slice %225 {offsets = [0, 0], sizes = [2, 32], strides = [1, 1]} : vector<2x128xf32> to vector<2x32xf32>
    %227 = arith.negf %226 : vector<2x32xf32>
    %228 = math.exp %227 : vector<2x32xf32>
    %cst_46 = arith.constant 1.000000e+00 : f32
    %229 = vector.broadcast %cst_46 : f32 to vector<2x32xf32>
    %230 = arith.addf %229, %228 : vector<2x32xf32>
    %231 = arith.divf %229, %230 : vector<2x32xf32>
    %232 = vector.extract_strided_slice %225 {offsets = [0, 32], sizes = [2, 32], strides = [1, 1]} : vector<2x128xf32> to vector<2x32xf32>
    %233 = arith.negf %232 : vector<2x32xf32>
    %234 = math.exp %233 : vector<2x32xf32>
    %cst_47 = arith.constant 1.000000e+00 : f32
    %235 = vector.broadcast %cst_47 : f32 to vector<2x32xf32>
    %236 = arith.addf %235, %234 : vector<2x32xf32>
    %237 = arith.divf %235, %236 : vector<2x32xf32>
    %238 = vector.extract_strided_slice %225 {offsets = [0, 64], sizes = [2, 32], strides = [1, 1]} : vector<2x128xf32> to vector<2x32xf32>
    %239 = vector.extract_strided_slice %225 {offsets = [0, 96], sizes = [2, 32], strides = [1, 1]} : vector<2x128xf32> to vector<2x32xf32>
    %240 = arith.mulf %231, %239 : vector<2x32xf32>
    %241 = arith.addf %238, %240 : vector<2x32xf32>
    %242 = math.tanh %241 : vector<2x32xf32>
    %cst_48 = arith.constant 1.000000e+00 : f32
    %243 = vector.broadcast %cst_48 : f32 to vector<2x32xf32>
    %244 = arith.subf %243, %237 : vector<2x32xf32>
    %245 = arith.mulf %244, %242 : vector<2x32xf32>
    %246 = arith.mulf %237, %195 : vector<2x32xf32>
    %247 = arith.addf %245, %246 : vector<2x32xf32>
    %248 = tpu.concatenate %247, %220 in 1 : vector<2x32xf32>, vector<2x32xf32> -> vector<2x64xf32>
    %cst_49 = arith.constant dense<0.000000e+00> : vector<2x128xf32>
    %249 = tpu.matmul %248, %1, %cst_49 {dimension_numbers = #tpu.dot_dimension_numbers<[1], [0], [0], [1], [0, 0, 1, 1], [], []>} : vector<2x64xf32>, vector<64x128xf32>, vector<2x128xf32> -> vector<2x128xf32>
    %250 = arith.addf %249, %4 : vector<2x128xf32>
    %251 = vector.extract_strided_slice %250 {offsets = [0, 0], sizes = [2, 32], strides = [1, 1]} : vector<2x128xf32> to vector<2x32xf32>
    %252 = arith.negf %251 : vector<2x32xf32>
    %253 = math.exp %252 : vector<2x32xf32>
    %cst_50 = arith.constant 1.000000e+00 : f32
    %254 = vector.broadcast %cst_50 : f32 to vector<2x32xf32>
    %255 = arith.addf %254, %253 : vector<2x32xf32>
    %256 = arith.divf %254, %255 : vector<2x32xf32>
    %257 = vector.extract_strided_slice %250 {offsets = [0, 32], sizes = [2, 32], strides = [1, 1]} : vector<2x128xf32> to vector<2x32xf32>
    %258 = arith.negf %257 : vector<2x32xf32>
    %259 = math.exp %258 : vector<2x32xf32>
    %cst_51 = arith.constant 1.000000e+00 : f32
    %260 = vector.broadcast %cst_51 : f32 to vector<2x32xf32>
    %261 = arith.addf %260, %259 : vector<2x32xf32>
    %262 = arith.divf %260, %261 : vector<2x32xf32>
    %263 = vector.extract_strided_slice %250 {offsets = [0, 64], sizes = [2, 32], strides = [1, 1]} : vector<2x128xf32> to vector<2x32xf32>
    %264 = vector.extract_strided_slice %250 {offsets = [0, 96], sizes = [2, 32], strides = [1, 1]} : vector<2x128xf32> to vector<2x32xf32>
    %265 = arith.mulf %256, %264 : vector<2x32xf32>
    %266 = arith.addf %263, %265 : vector<2x32xf32>
    %267 = math.tanh %266 : vector<2x32xf32>
    %cst_52 = arith.constant 1.000000e+00 : f32
    %268 = vector.broadcast %cst_52 : f32 to vector<2x32xf32>
    %269 = arith.subf %268, %262 : vector<2x32xf32>
    %270 = arith.mulf %269, %267 : vector<2x32xf32>
    %271 = arith.mulf %262, %220 : vector<2x32xf32>
    %272 = arith.addf %270, %271 : vector<2x32xf32>
    %273 = vector.extract_strided_slice %10 {offsets = [5, 0], sizes = [1, 128], strides = [1, 1]} : vector<16x128xf32> to vector<1x128xf32>
    %274 = vector.extract_strided_slice %10 {offsets = [13, 0], sizes = [1, 128], strides = [1, 1]} : vector<16x128xf32> to vector<1x128xf32>
    %275 = tpu.concatenate %273, %274 in 0 : vector<1x128xf32>, vector<1x128xf32> -> vector<2x128xf32>
    %cst_53 = arith.constant dense<0.000000e+00> : vector<2x128xf32>
    %276 = tpu.matmul %247, %0, %cst_53 {dimension_numbers = #tpu.dot_dimension_numbers<[1], [0], [0], [1], [0, 0, 1, 1], [], []>} : vector<2x32xf32>, vector<32x128xf32>, vector<2x128xf32> -> vector<2x128xf32>
    %277 = arith.addf %275, %276 : vector<2x128xf32>
    %278 = vector.extract_strided_slice %277 {offsets = [0, 0], sizes = [2, 32], strides = [1, 1]} : vector<2x128xf32> to vector<2x32xf32>
    %279 = arith.negf %278 : vector<2x32xf32>
    %280 = math.exp %279 : vector<2x32xf32>
    %cst_54 = arith.constant 1.000000e+00 : f32
    %281 = vector.broadcast %cst_54 : f32 to vector<2x32xf32>
    %282 = arith.addf %281, %280 : vector<2x32xf32>
    %283 = arith.divf %281, %282 : vector<2x32xf32>
    %284 = vector.extract_strided_slice %277 {offsets = [0, 32], sizes = [2, 32], strides = [1, 1]} : vector<2x128xf32> to vector<2x32xf32>
    %285 = arith.negf %284 : vector<2x32xf32>
    %286 = math.exp %285 : vector<2x32xf32>
    %cst_55 = arith.constant 1.000000e+00 : f32
    %287 = vector.broadcast %cst_55 : f32 to vector<2x32xf32>
    %288 = arith.addf %287, %286 : vector<2x32xf32>
    %289 = arith.divf %287, %288 : vector<2x32xf32>
    %290 = vector.extract_strided_slice %277 {offsets = [0, 64], sizes = [2, 32], strides = [1, 1]} : vector<2x128xf32> to vector<2x32xf32>
    %291 = vector.extract_strided_slice %277 {offsets = [0, 96], sizes = [2, 32], strides = [1, 1]} : vector<2x128xf32> to vector<2x32xf32>
    %292 = arith.mulf %283, %291 : vector<2x32xf32>
    %293 = arith.addf %290, %292 : vector<2x32xf32>
    %294 = math.tanh %293 : vector<2x32xf32>
    %cst_56 = arith.constant 1.000000e+00 : f32
    %295 = vector.broadcast %cst_56 : f32 to vector<2x32xf32>
    %296 = arith.subf %295, %289 : vector<2x32xf32>
    %297 = arith.mulf %296, %294 : vector<2x32xf32>
    %298 = arith.mulf %289, %247 : vector<2x32xf32>
    %299 = arith.addf %297, %298 : vector<2x32xf32>
    %300 = tpu.concatenate %299, %272 in 1 : vector<2x32xf32>, vector<2x32xf32> -> vector<2x64xf32>
    %cst_57 = arith.constant dense<0.000000e+00> : vector<2x128xf32>
    %301 = tpu.matmul %300, %1, %cst_57 {dimension_numbers = #tpu.dot_dimension_numbers<[1], [0], [0], [1], [0, 0, 1, 1], [], []>} : vector<2x64xf32>, vector<64x128xf32>, vector<2x128xf32> -> vector<2x128xf32>
    %302 = arith.addf %301, %4 : vector<2x128xf32>
    %303 = vector.extract_strided_slice %302 {offsets = [0, 0], sizes = [2, 32], strides = [1, 1]} : vector<2x128xf32> to vector<2x32xf32>
    %304 = arith.negf %303 : vector<2x32xf32>
    %305 = math.exp %304 : vector<2x32xf32>
    %cst_58 = arith.constant 1.000000e+00 : f32
    %306 = vector.broadcast %cst_58 : f32 to vector<2x32xf32>
    %307 = arith.addf %306, %305 : vector<2x32xf32>
    %308 = arith.divf %306, %307 : vector<2x32xf32>
    %309 = vector.extract_strided_slice %302 {offsets = [0, 32], sizes = [2, 32], strides = [1, 1]} : vector<2x128xf32> to vector<2x32xf32>
    %310 = arith.negf %309 : vector<2x32xf32>
    %311 = math.exp %310 : vector<2x32xf32>
    %cst_59 = arith.constant 1.000000e+00 : f32
    %312 = vector.broadcast %cst_59 : f32 to vector<2x32xf32>
    %313 = arith.addf %312, %311 : vector<2x32xf32>
    %314 = arith.divf %312, %313 : vector<2x32xf32>
    %315 = vector.extract_strided_slice %302 {offsets = [0, 64], sizes = [2, 32], strides = [1, 1]} : vector<2x128xf32> to vector<2x32xf32>
    %316 = vector.extract_strided_slice %302 {offsets = [0, 96], sizes = [2, 32], strides = [1, 1]} : vector<2x128xf32> to vector<2x32xf32>
    %317 = arith.mulf %308, %316 : vector<2x32xf32>
    %318 = arith.addf %315, %317 : vector<2x32xf32>
    %319 = math.tanh %318 : vector<2x32xf32>
    %cst_60 = arith.constant 1.000000e+00 : f32
    %320 = vector.broadcast %cst_60 : f32 to vector<2x32xf32>
    %321 = arith.subf %320, %314 : vector<2x32xf32>
    %322 = arith.mulf %321, %319 : vector<2x32xf32>
    %323 = arith.mulf %314, %272 : vector<2x32xf32>
    %324 = arith.addf %322, %323 : vector<2x32xf32>
    %325 = vector.extract_strided_slice %10 {offsets = [6, 0], sizes = [1, 128], strides = [1, 1]} : vector<16x128xf32> to vector<1x128xf32>
    %326 = vector.extract_strided_slice %10 {offsets = [14, 0], sizes = [1, 128], strides = [1, 1]} : vector<16x128xf32> to vector<1x128xf32>
    %327 = tpu.concatenate %325, %326 in 0 : vector<1x128xf32>, vector<1x128xf32> -> vector<2x128xf32>
    %cst_61 = arith.constant dense<0.000000e+00> : vector<2x128xf32>
    %328 = tpu.matmul %299, %0, %cst_61 {dimension_numbers = #tpu.dot_dimension_numbers<[1], [0], [0], [1], [0, 0, 1, 1], [], []>} : vector<2x32xf32>, vector<32x128xf32>, vector<2x128xf32> -> vector<2x128xf32>
    %329 = arith.addf %327, %328 : vector<2x128xf32>
    %330 = vector.extract_strided_slice %329 {offsets = [0, 0], sizes = [2, 32], strides = [1, 1]} : vector<2x128xf32> to vector<2x32xf32>
    %331 = arith.negf %330 : vector<2x32xf32>
    %332 = math.exp %331 : vector<2x32xf32>
    %cst_62 = arith.constant 1.000000e+00 : f32
    %333 = vector.broadcast %cst_62 : f32 to vector<2x32xf32>
    %334 = arith.addf %333, %332 : vector<2x32xf32>
    %335 = arith.divf %333, %334 : vector<2x32xf32>
    %336 = vector.extract_strided_slice %329 {offsets = [0, 32], sizes = [2, 32], strides = [1, 1]} : vector<2x128xf32> to vector<2x32xf32>
    %337 = arith.negf %336 : vector<2x32xf32>
    %338 = math.exp %337 : vector<2x32xf32>
    %cst_63 = arith.constant 1.000000e+00 : f32
    %339 = vector.broadcast %cst_63 : f32 to vector<2x32xf32>
    %340 = arith.addf %339, %338 : vector<2x32xf32>
    %341 = arith.divf %339, %340 : vector<2x32xf32>
    %342 = vector.extract_strided_slice %329 {offsets = [0, 64], sizes = [2, 32], strides = [1, 1]} : vector<2x128xf32> to vector<2x32xf32>
    %343 = vector.extract_strided_slice %329 {offsets = [0, 96], sizes = [2, 32], strides = [1, 1]} : vector<2x128xf32> to vector<2x32xf32>
    %344 = arith.mulf %335, %343 : vector<2x32xf32>
    %345 = arith.addf %342, %344 : vector<2x32xf32>
    %346 = math.tanh %345 : vector<2x32xf32>
    %cst_64 = arith.constant 1.000000e+00 : f32
    %347 = vector.broadcast %cst_64 : f32 to vector<2x32xf32>
    %348 = arith.subf %347, %341 : vector<2x32xf32>
    %349 = arith.mulf %348, %346 : vector<2x32xf32>
    %350 = arith.mulf %341, %299 : vector<2x32xf32>
    %351 = arith.addf %349, %350 : vector<2x32xf32>
    %352 = tpu.concatenate %351, %324 in 1 : vector<2x32xf32>, vector<2x32xf32> -> vector<2x64xf32>
    %cst_65 = arith.constant dense<0.000000e+00> : vector<2x128xf32>
    %353 = tpu.matmul %352, %1, %cst_65 {dimension_numbers = #tpu.dot_dimension_numbers<[1], [0], [0], [1], [0, 0, 1, 1], [], []>} : vector<2x64xf32>, vector<64x128xf32>, vector<2x128xf32> -> vector<2x128xf32>
    %354 = arith.addf %353, %4 : vector<2x128xf32>
    %355 = vector.extract_strided_slice %354 {offsets = [0, 0], sizes = [2, 32], strides = [1, 1]} : vector<2x128xf32> to vector<2x32xf32>
    %356 = arith.negf %355 : vector<2x32xf32>
    %357 = math.exp %356 : vector<2x32xf32>
    %cst_66 = arith.constant 1.000000e+00 : f32
    %358 = vector.broadcast %cst_66 : f32 to vector<2x32xf32>
    %359 = arith.addf %358, %357 : vector<2x32xf32>
    %360 = arith.divf %358, %359 : vector<2x32xf32>
    %361 = vector.extract_strided_slice %354 {offsets = [0, 32], sizes = [2, 32], strides = [1, 1]} : vector<2x128xf32> to vector<2x32xf32>
    %362 = arith.negf %361 : vector<2x32xf32>
    %363 = math.exp %362 : vector<2x32xf32>
    %cst_67 = arith.constant 1.000000e+00 : f32
    %364 = vector.broadcast %cst_67 : f32 to vector<2x32xf32>
    %365 = arith.addf %364, %363 : vector<2x32xf32>
    %366 = arith.divf %364, %365 : vector<2x32xf32>
    %367 = vector.extract_strided_slice %354 {offsets = [0, 64], sizes = [2, 32], strides = [1, 1]} : vector<2x128xf32> to vector<2x32xf32>
    %368 = vector.extract_strided_slice %354 {offsets = [0, 96], sizes = [2, 32], strides = [1, 1]} : vector<2x128xf32> to vector<2x32xf32>
    %369 = arith.mulf %360, %368 : vector<2x32xf32>
    %370 = arith.addf %367, %369 : vector<2x32xf32>
    %371 = math.tanh %370 : vector<2x32xf32>
    %cst_68 = arith.constant 1.000000e+00 : f32
    %372 = vector.broadcast %cst_68 : f32 to vector<2x32xf32>
    %373 = arith.subf %372, %366 : vector<2x32xf32>
    %374 = arith.mulf %373, %371 : vector<2x32xf32>
    %375 = arith.mulf %366, %324 : vector<2x32xf32>
    %376 = arith.addf %374, %375 : vector<2x32xf32>
    %377 = vector.extract_strided_slice %10 {offsets = [7, 0], sizes = [1, 128], strides = [1, 1]} : vector<16x128xf32> to vector<1x128xf32>
    %378 = vector.extract_strided_slice %10 {offsets = [15, 0], sizes = [1, 128], strides = [1, 1]} : vector<16x128xf32> to vector<1x128xf32>
    %379 = tpu.concatenate %377, %378 in 0 : vector<1x128xf32>, vector<1x128xf32> -> vector<2x128xf32>
    %cst_69 = arith.constant dense<0.000000e+00> : vector<2x128xf32>
    %380 = tpu.matmul %351, %0, %cst_69 {dimension_numbers = #tpu.dot_dimension_numbers<[1], [0], [0], [1], [0, 0, 1, 1], [], []>} : vector<2x32xf32>, vector<32x128xf32>, vector<2x128xf32> -> vector<2x128xf32>
    %381 = arith.addf %379, %380 : vector<2x128xf32>
    %382 = vector.extract_strided_slice %381 {offsets = [0, 0], sizes = [2, 32], strides = [1, 1]} : vector<2x128xf32> to vector<2x32xf32>
    %383 = arith.negf %382 : vector<2x32xf32>
    %384 = math.exp %383 : vector<2x32xf32>
    %cst_70 = arith.constant 1.000000e+00 : f32
    %385 = vector.broadcast %cst_70 : f32 to vector<2x32xf32>
    %386 = arith.addf %385, %384 : vector<2x32xf32>
    %387 = arith.divf %385, %386 : vector<2x32xf32>
    %388 = vector.extract_strided_slice %381 {offsets = [0, 32], sizes = [2, 32], strides = [1, 1]} : vector<2x128xf32> to vector<2x32xf32>
    %389 = arith.negf %388 : vector<2x32xf32>
    %390 = math.exp %389 : vector<2x32xf32>
    %cst_71 = arith.constant 1.000000e+00 : f32
    %391 = vector.broadcast %cst_71 : f32 to vector<2x32xf32>
    %392 = arith.addf %391, %390 : vector<2x32xf32>
    %393 = arith.divf %391, %392 : vector<2x32xf32>
    %394 = vector.extract_strided_slice %381 {offsets = [0, 64], sizes = [2, 32], strides = [1, 1]} : vector<2x128xf32> to vector<2x32xf32>
    %395 = vector.extract_strided_slice %381 {offsets = [0, 96], sizes = [2, 32], strides = [1, 1]} : vector<2x128xf32> to vector<2x32xf32>
    %396 = arith.mulf %387, %395 : vector<2x32xf32>
    %397 = arith.addf %394, %396 : vector<2x32xf32>
    %398 = math.tanh %397 : vector<2x32xf32>
    %cst_72 = arith.constant 1.000000e+00 : f32
    %399 = vector.broadcast %cst_72 : f32 to vector<2x32xf32>
    %400 = arith.subf %399, %393 : vector<2x32xf32>
    %401 = arith.mulf %400, %398 : vector<2x32xf32>
    %402 = arith.mulf %393, %351 : vector<2x32xf32>
    %403 = arith.addf %401, %402 : vector<2x32xf32>
    %404 = tpu.concatenate %403, %376 in 1 : vector<2x32xf32>, vector<2x32xf32> -> vector<2x64xf32>
    %cst_73 = arith.constant dense<0.000000e+00> : vector<2x128xf32>
    %405 = tpu.matmul %404, %1, %cst_73 {dimension_numbers = #tpu.dot_dimension_numbers<[1], [0], [0], [1], [0, 0, 1, 1], [], []>} : vector<2x64xf32>, vector<64x128xf32>, vector<2x128xf32> -> vector<2x128xf32>
    %406 = arith.addf %405, %4 : vector<2x128xf32>
    %407 = vector.extract_strided_slice %406 {offsets = [0, 0], sizes = [2, 32], strides = [1, 1]} : vector<2x128xf32> to vector<2x32xf32>
    %408 = arith.negf %407 : vector<2x32xf32>
    %409 = math.exp %408 : vector<2x32xf32>
    %cst_74 = arith.constant 1.000000e+00 : f32
    %410 = vector.broadcast %cst_74 : f32 to vector<2x32xf32>
    %411 = arith.addf %410, %409 : vector<2x32xf32>
    %412 = arith.divf %410, %411 : vector<2x32xf32>
    %413 = vector.extract_strided_slice %406 {offsets = [0, 32], sizes = [2, 32], strides = [1, 1]} : vector<2x128xf32> to vector<2x32xf32>
    %414 = arith.negf %413 : vector<2x32xf32>
    %415 = math.exp %414 : vector<2x32xf32>
    %cst_75 = arith.constant 1.000000e+00 : f32
    %416 = vector.broadcast %cst_75 : f32 to vector<2x32xf32>
    %417 = arith.addf %416, %415 : vector<2x32xf32>
    %418 = arith.divf %416, %417 : vector<2x32xf32>
    %419 = vector.extract_strided_slice %406 {offsets = [0, 64], sizes = [2, 32], strides = [1, 1]} : vector<2x128xf32> to vector<2x32xf32>
    %420 = vector.extract_strided_slice %406 {offsets = [0, 96], sizes = [2, 32], strides = [1, 1]} : vector<2x128xf32> to vector<2x32xf32>
    %421 = arith.mulf %412, %420 : vector<2x32xf32>
    %422 = arith.addf %419, %421 : vector<2x32xf32>
    %423 = math.tanh %422 : vector<2x32xf32>
    %cst_76 = arith.constant 1.000000e+00 : f32
    %424 = vector.broadcast %cst_76 : f32 to vector<2x32xf32>
    %425 = arith.subf %424, %418 : vector<2x32xf32>
    %426 = arith.mulf %425, %423 : vector<2x32xf32>
    %427 = arith.mulf %418, %376 : vector<2x32xf32>
    %428 = arith.addf %426, %427 : vector<2x32xf32>
    %c0_77 = arith.constant 0 : index
    %c0_78 = arith.constant 0 : index
    %429 = vector.load %arg6[%c0_77, %c0_78] : memref<32x5xf32, #tpu.memory_space<vmem>>, vector<32x5xf32>
    %cst_79 = arith.constant dense<0.000000e+00> : vector<2x5xf32>
    %430 = tpu.matmul %428, %429, %cst_79 {dimension_numbers = #tpu.dot_dimension_numbers<[1], [0], [0], [1], [0, 0, 1, 1], [], []>} : vector<2x32xf32>, vector<32x5xf32>, vector<2x5xf32> -> vector<2x5xf32>
    %c0_80 = arith.constant 0 : index
    %c0_81 = arith.constant 0 : index
    %431 = vector.load %arg7[%c0_80, %c0_81] : memref<1x5xf32, #tpu.memory_space<vmem>>, vector<1x5xf32>
    %432 = vector.broadcast %431 : vector<1x5xf32> to vector<2x5xf32>
    %433 = arith.addf %430, %432 : vector<2x5xf32>
    %c0_82 = arith.constant 0 : index
    %c0_83 = arith.constant 0 : index
    %434 = vector.load %arg8[%c0_82, %c0_83] : memref<2x5xf32, #tpu.memory_space<vmem>>, vector<2x5xf32>
    tpu.vector_store %arg8[%c0_82, %c0_83], %433 {strides = array<i32>} : memref<2x5xf32, #tpu.memory_space<vmem>>, vector<2x5xf32>,
    return
  }
}

</mosaic_0001>

<llo_original>
// kernel: tpu_custom_call.1
$region0: #{tpu_custom_call.1}
  #allocation0 [shape = 'u32[]', space=smem, size = 0x4, offset = 0x4, fixed_abs, tag = 'smem constant byte address 0x4 - core index']
  #allocation1 [shape = 'u32[72,128]{1,0:T(1,128)}', space=vmem, size = 0x9000, scoped, tag = 'internal scratch']
  %s0 = inlined_call_operand.vmem [shape: f32[16,5], index: 0, kind: input, shape index: {}]
  %s1 = inlined_call_operand.vmem [shape: f32[5,128], index: 1, kind: input, shape index: {}]
  %s2 = inlined_call_operand.vmem [shape: f32[1,128], index: 2, kind: input, shape index: {}]
  %s3 = inlined_call_operand.vmem [shape: f32[32,128], index: 3, kind: input, shape index: {}]
  %s4 = inlined_call_operand.hbm [shape: f32[64,128], index: 4, kind: input, shape index: {}]
  %s5 = inlined_call_operand.vmem [shape: f32[1,128], index: 5, kind: input, shape index: {}]
  %s6 = inlined_call_operand.vmem [shape: f32[32,5], index: 6, kind: input, shape index: {}]
  %s7 = inlined_call_operand.vmem [shape: f32[1,5], index: 7, kind: input, shape index: {}]
  %s8 = inlined_call_operand.hbm [shape: f32[2,5], index: 8, kind: output, shape index: {}]
  %s9 = sld [smem:[#allocation0]]
  $region46: #{tpu_custom_call.1} parent=0
    _
  %s11 = ssub.s32 1, %s9
  %s12 = scalar_select 0, %s11, %s9
  $region1: #{tpu_custom_call.1} parent=0
    #allocation2 [shape = 'u8[32768]{0}', space=vmem, size = 0x8000, scoped, tag = 'input window, operand 4, single buffered']
    #allocation3 [shape = 's32[1]{0}', space=sflag, size = 0x4, scoped, tag = 'scoped memory for tpu_custom_call.1']
    #allocation4 [shape = 's32[1]{0}', space=sflag, size = 0x4, scoped, tag = 'scoped memory for tpu_custom_call.1']
    #allocation5 [shape = 'u8[1024]{0}', space=vmem, size = 0x400, scoped, tag = 'output window, operand 0, single buffered']
    %13 = vsyncpa [#allocation3], 0
    %14 = vsyncpa [#allocation4], 0
    // Predicated region
    $region2: #{tpu_custom_call.1} parent=1 // pred_check
      _
    $region3: #{tpu_custom_call.1} parent=1 // pred_check_branch
      %16 = sbr.rel (0) target = $region5
    $region4: #{tpu_custom_call.1} parent=1 // pred_region
      _
    $region5: #{tpu_custom_call.1} parent=1 // pred_fallthru
      _
    // Predicated region
    $region6: #{tpu_custom_call.1} parent=1 // pred_check
      _
    $region7: #{tpu_custom_call.1} parent=1 // pred_check_branch
      %18 = sbr.rel (0) target = $region9
    $region8: #{tpu_custom_call.1} parent=1 // pred_region
      _
    $region9: #{tpu_custom_call.1} parent=1 // pred_fallthru
      _
    // Predicated region
    $region10: #{tpu_custom_call.1} parent=1 // pred_check
      _
    $region11: #{tpu_custom_call.1} parent=1 // pred_check_branch
      %20 = sbr.rel (0) target = $region13
    $region12: #{tpu_custom_call.1} parent=1 // pred_region
      _
    $region13: #{tpu_custom_call.1} parent=1 // pred_fallthru
      _
    // Predicated region
    $region14: #{tpu_custom_call.1} parent=1 // pred_check
      _
    $region15: #{tpu_custom_call.1} parent=1 // pred_check_branch
      %22 = sbr.rel (0) target = $region17
    $region16: #{tpu_custom_call.1} parent=1 // pred_region
      _
    $region17: #{tpu_custom_call.1} parent=1 // pred_fallthru
      _
    // Predicated region
    $region18: #{tpu_custom_call.1} parent=1 // pred_check
      _
    $region19: #{tpu_custom_call.1} parent=1 // pred_check_branch
      %24 = sbr.rel (0) target = $region21
    $region20: #{tpu_custom_call.1} parent=1 // pred_region
      %26 = vsyncadd [#allocation3], 0
      %s27 = sshll.u32 %s4, 4
      %s28 = int_to_ptr.hbm [resolvable:$true] %s27
      %s29 = sshll.u32 [#allocation2], 4
      %s30 = int_to_ptr.vmem [resolvable:$true] %s29
      %35 = dma.hbm_to_vmem [thread:$0]  %s28, 1024, %s30, [#allocation3], 128, 128, 8
    $region21: #{tpu_custom_call.1} parent=1 // pred_fallthru
      _
    // Predicated region
    $region22: #{tpu_custom_call.1} parent=1 // pred_check
      _
    $region23: #{tpu_custom_call.1} parent=1 // pred_check_branch
      %37 = sbr.rel (0) target = $region25
    $region24: #{tpu_custom_call.1} parent=1 // pred_region
      _
    $region25: #{tpu_custom_call.1} parent=1 // pred_fallthru
      _
    // Predicated region
    $region26: #{tpu_custom_call.1} parent=1 // pred_check
      _
    $region27: #{tpu_custom_call.1} parent=1 // pred_check_branch
      %39 = sbr.rel (0) target = $region29
    $region28: #{tpu_custom_call.1} parent=1 // pred_region
      _
    $region29: #{tpu_custom_call.1} parent=1 // pred_fallthru
      _
    // Predicated region
    $region30: #{tpu_custom_call.1} parent=1 // pred_check
      _
    $region31: #{tpu_custom_call.1} parent=1 // pred_check_branch
      %41 = sbr.rel (0) target = $region33
    $region32: #{tpu_custom_call.1} parent=1 // pred_region
      _
    $region33: #{tpu_custom_call.1} parent=1 // pred_fallthru
      _
    // Predicated region
    $region34: #{tpu_custom_call.1} parent=1 // pred_check
      _
    $region35: #{tpu_custom_call.1} parent=1 // pred_check_branch
      %43 = sbr.rel (0) target = $region37
    $region36: #{tpu_custom_call.1} parent=1 // pred_region
      %45 = dma.done [#allocation3], 1024
    $region37: #{tpu_custom_call.1} parent=1 // pred_fallthru
      _
    %v46 = vld [vmem:[%s3] sm:$0xff]
    %v47 = vld [vmem:[%s3 + $0x8] sm:$0xff]
    %v48 = vld [vmem:[%s3 + $0x10] sm:$0xff]
    %v49 = vld [vmem:[%s3 + $0x18] sm:$0xff]
    %v50 = vld [vmem:[#allocation2] sm:$0xff]
    %v51 = vld [vmem:[#allocation2 + $0x8] sm:$0xff]
    %v52 = vld [vmem:[#allocation2 + $0x10] sm:$0xff]
    %v53 = vld [vmem:[#allocation2 + $0x18] sm:$0xff]
    %v54 = vld [vmem:[#allocation2 + $0x20] sm:$0xff]
    %v55 = vld [vmem:[#allocation2 + $0x28] sm:$0xff]
    %v56 = vld [vmem:[#allocation2 + $0x30] sm:$0xff]
    %v57 = vld [vmem:[#allocation2 + $0x38] sm:$0xff]
    %v58 = vld [vmem:[%s5] sm:$0x1]
    %v60 = vperm.slane %v58, 0
    %v62 = vld [vmem:[%s0] sm:$0xff]
    %v63 = vld [vmem:[%s0 + $0x8] sm:$0xff]
    %v64 = vld [vmem:[%s1] sm:$0x1f]
    %v65 = vld [vmem:[%s2] sm:$0x1]
    %v67 = vperm.slane %v65, 0
    %vm69 = vcmask 39936
    %v71 = vsel %vm69, %v62, 0
    %v74 = vsel %vm69, %v63, 0
    %vm76 = vcmask 1044480
    %v78 = vsel %vm76, %v64, 0
    %80 = vmatpush.msra.mxu0 0.0
    %81 = vmatpush.msra.mxu0 0.0
    %82 = vmatpush.msra.mxu0 0.0
    %83 = vmatpush.msra.mxu0 0.0
    %84 = vmatpush.msra.mxu0 0.0
    %85 = vmatpush.msra.mxu0 0.0
    %86 = vmatpush.msra.mxu0 0.0
    %87 = vmatpush.msra.mxu0 0.0
    %88 = vmatpush.msra.mxu0 0.0
    %89 = vmatpush.msra.mxu0 0.0
    %90 = vmatpush.msra.mxu0 0.0
    %91 = vmatpush.msra.mxu0 0.0
    %92 = vmatpush.msra.mxu0 0.0
    %93 = vmatpush.msra.mxu0 0.0
    %94 = vmatpush.msra.mxu0 0.0
    %95 = vmatpush.msra.mxu0 %v78
    %96 = vmatmul.f32.gmra.mxu0 %v71
    %v97 = vpop.f32.mrf.mxu0
    %v98 = vadd.f32 %v67, %v97
    %99 = vmatmul.f32.gmra.mxu0 %v74
    %v100 = vpop.f32.mrf.mxu0
    %v101 = vadd.f32 %v67, %v100
    %102 = vdwg.mxu0
    %v104 = vrot.slane %v101, 7
    %vm106 = vcmask 1040384
    %v107 = vsel %vm106, %v98, %v104
    %vm108 = vcmask 261120
    %v110 = vsel %vm108, 0.0, 0
    %112 = vmatpush.msra.mxu0 0.0
    %113 = vmatpush.msra.mxu0 0.0
    %114 = vmatpush.msra.mxu0 0.0
    %115 = vmatpush.msra.mxu0 0.0
    %116 = vmatpush.msra.mxu0 0.0
    %117 = vmatpush.msra.mxu0 0.0
    %118 = vmatpush.msra.mxu0 0.0
    %119 = vmatpush.msra.mxu0 0.0
    %120 = vmatpush.msra.mxu0 0.0
    %121 = vmatpush.msra.mxu0 0.0
    %122 = vmatpush.msra.mxu0 0.0
    %123 = vmatpush.msra.mxu0 0.0
    %124 = vmatpush.msra.mxu0 %v49
    %125 = vmatpush.msra.mxu0 %v48
    %126 = vmatpush.msra.mxu0 %v47
    %127 = vmatpush.msra.mxu0 %v46
    %128 = vmatmul.f32.gmra.mxu0 %v110
    %v129 = vpop.f32.mrf.mxu0
    %v130 = vadd.f32 0.0, %v129
    %131 = vdwg.mxu0
    %v132 = vadd.f32 %v107, %v130
    %v133 = vxor.u32 %v132, 2147483648
    %v134 = vmul.f32 %v133, 1.442695
    %v135 = vpow.pop %v134
    %v136 = vadd.f32 %v135, 1.0
    %v137 = vrcp.pop %v136
    %v138 = vmul.f32 %v136, %v137
    %v139 = vsub.f32 1.0, %v138
    %v140 = vmul.f32 %v137, %v139
    %v141 = vadd.f32 %v137, %v140
    %vm142 = vweird.f32 %v136
    %vm143 = vweird.f32 %v137
    %vm144 = vmor %vm142, %vm143
    %v145 = vsel %vm144, %v137, %v141
    %v146 = vand.u32 2147483647, %v136
    %vm147 = vcmp.eq.f32.partialorder %v146, 8.507059e+37
    %v148 = vand.u32 %v136, 2147483648
    %v149 = vor.u32 1.1754944e-38, %v148
    %v150 = vsel %vm147, %v149, %v145
    %v151 = vmul.f32 1.0, %v150
    %153 = vrot.lane.b32.xlu0 %v132, 32
    %v154 = vpop.permute.xlu0 %153
    %v156 = vmul.f32 %v151, %v154
    %158 = vrot.lane.b32.xlu0 %v156, 64
    %v159 = vpop.permute.xlu0 %158
    %v161 = vadd.f32 %v132, %v159
    %v162 = vtanh.pop %v161
    %v163 = vsub.f32 1.0, %v151
    %165 = vrot.lane.b32.xlu0 %v162, 96
    %v166 = vpop.permute.xlu0 %165
    %v168 = vmul.f32 %v163, %v166
    %v169 = vmul.f32 %v151, 0.0
    %v170 = vadd.f32 %v168, %v169
    %172 = vrot.lane.b32.xlu0 %v170, 96
    %v173 = vpop.permute.xlu0 %172
    %v175 = vsel %vm108, %v173, 0.0
    %vm176 = vcmask 523264
    %v178 = vsel %vm176, %v175, 0
    %180 = vmatpush.msra.mxu0 0.0
    %181 = vmatpush.msra.mxu0 0.0
    %182 = vmatpush.msra.mxu0 0.0
    %183 = vmatpush.msra.mxu0 0.0
    %184 = vmatpush.msra.mxu0 0.0
    %185 = vmatpush.msra.mxu0 0.0
    %186 = vmatpush.msra.mxu0 0.0
    %187 = vmatpush.msra.mxu0 0.0
    %188 = vmatpush.msra.mxu0 %v57
    %189 = vmatpush.msra.mxu0 %v56
    %190 = vmatpush.msra.mxu0 %v55
    %191 = vmatpush.msra.mxu0 %v54
    %192 = vmatpush.msra.mxu0 %v53
    %193 = vmatpush.msra.mxu0 %v52
    %194 = vmatpush.msra.mxu0 %v51
    %195 = vmatpush.msra.mxu0 %v50
    %196 = vmatmul.f32.gmra.mxu0 %v178
    %v197 = vpop.f32.mrf.mxu0
    %v198 = vadd.f32 %v60, %v197
    %199 = vdwg.mxu0
    %v200 = vxor.u32 %v198, 2147483648
    %v201 = vmul.f32 %v200, 1.442695
    %v202 = vpow.pop %v201
    %v203 = vadd.f32 %v202, 1.0
    %v204 = vrcp.pop %v203
    %v205 = vmul.f32 %v203, %v204
    %v206 = vsub.f32 1.0, %v205
    %v207 = vmul.f32 %v204, %v206
    %v208 = vadd.f32 %v204, %v207
    %vm209 = vweird.f32 %v203
    %vm210 = vweird.f32 %v204
    %vm211 = vmor %vm209, %vm210
    %v212 = vsel %vm211, %v204, %v208
    %v213 = vand.u32 2147483647, %v203
    %vm214 = vcmp.eq.f32.partialorder %v213, 8.507059e+37
    %v215 = vand.u32 %v203, 2147483648
    %v216 = vor.u32 1.1754944e-38, %v215
    %v217 = vsel %vm214, %v216, %v212
    %v218 = vmul.f32 1.0, %v217
    %220 = vrot.lane.b32.xlu0 %v198, 32
    %v221 = vpop.permute.xlu0 %220
    %v223 = vmul.f32 %v218, %v221
    %225 = vrot.lane.b32.xlu0 %v223, 64
    %v226 = vpop.permute.xlu0 %225
    %v228 = vadd.f32 %v198, %v226
    %v229 = vtanh.pop %v228
    %v230 = vsub.f32 1.0, %v218
    %232 = vrot.lane.b32.xlu0 %v229, 96
    %v233 = vpop.permute.xlu0 %232
    %v235 = vmul.f32 %v230, %v233
    %v236 = vmul.f32 %v218, 0.0
    %v237 = vadd.f32 %v235, %v236
    %v239 = vrot.slane %v98, 1
    %v241 = vsel %vm106, %v239, %v101
    %v242 = vsel %vm108, %v173, 0
    %244 = vmatpush.msra.mxu0 0.0
    %245 = vmatpush.msra.mxu0 0.0
    %246 = vmatpush.msra.mxu0 0.0
    %247 = vmatpush.msra.mxu0 0.0
    %248 = vmatpush.msra.mxu0 0.0
    %249 = vmatpush.msra.mxu0 0.0
    %250 = vmatpush.msra.mxu0 0.0
    %251 = vmatpush.msra.mxu0 0.0
    %252 = vmatpush.msra.mxu0 0.0
    %253 = vmatpush.msra.mxu0 0.0
    %254 = vmatpush.msra.mxu0 0.0
    %255 = vmatpush.msra.mxu0 0.0
    %256 = vmatpush.msra.mxu0 %v49
    %257 = vmatpush.msra.mxu0 %v48
    %258 = vmatpush.msra.mxu0 %v47
    %259 = vmatpush.msra.mxu0 %v46
    %260 = vmatmul.f32.gmra.mxu0 %v242
    %v261 = vpop.f32.mrf.mxu0
    %v262 = vadd.f32 0.0, %v261
    %263 = vdwg.mxu0
    %v264 = vadd.f32 %v241, %v262
    %v265 = vxor.u32 %v264, 2147483648
    %v266 = vmul.f32 %v265, 1.442695
    %v267 = vpow.pop %v266
    %v268 = vadd.f32 %v267, 1.0
    %v269 = vrcp.pop %v268
    %v270 = vmul.f32 %v268, %v269
    %v271 = vsub.f32 1.0, %v270
    %v272 = vmul.f32 %v269, %v271
    %v273 = vadd.f32 %v269, %v272
    %vm274 = vweird.f32 %v268
    %vm275 = vweird.f32 %v269
    %vm276 = vmor %vm274, %vm275
    %v277 = vsel %vm276, %v269, %v273
    %v278 = vand.u32 2147483647, %v268
    %vm279 = vcmp.eq.f32.partialorder %v278, 8.507059e+37
    %v280 = vand.u32 %v268, 2147483648
    %v281 = vor.u32 1.1754944e-38, %v280
    %v282 = vsel %vm279, %v281, %v277
    %v283 = vmul.f32 1.0, %v282
    %285 = vrot.lane.b32.xlu0 %v264, 32
    %v286 = vpop.permute.xlu0 %285
    %v288 = vmul.f32 %v283, %v286
    %290 = vrot.lane.b32.xlu0 %v288, 64
    %v291 = vpop.permute.xlu0 %290
    %v293 = vadd.f32 %v264, %v291
    %v294 = vtanh.pop %v293
    %v295 = vsub.f32 1.0, %v283
    %297 = vrot.lane.b32.xlu0 %v294, 96
    %v298 = vpop.permute.xlu0 %297
    %v300 = vmul.f32 %v295, %v298
    %v301 = vmul.f32 %v283, %v170
    %v302 = vadd.f32 %v300, %v301
    %304 = vrot.lane.b32.xlu0 %v302, 96
    %v305 = vpop.permute.xlu0 %304
    %v307 = vsel %vm108, %v305, %v237
    %v309 = vsel %vm176, %v307, 0
    %311 = vmatpush.msra.mxu0 0.0
    %312 = vmatpush.msra.mxu0 0.0
    %313 = vmatpush.msra.mxu0 0.0
    %314 = vmatpush.msra.mxu0 0.0
    %315 = vmatpush.msra.mxu0 0.0
    %316 = vmatpush.msra.mxu0 0.0
    %317 = vmatpush.msra.mxu0 0.0
    %318 = vmatpush.msra.mxu0 0.0
    %319 = vmatpush.msra.mxu0 %v57
    %320 = vmatpush.msra.mxu0 %v56
    %321 = vmatpush.msra.mxu0 %v55
    %322 = vmatpush.msra.mxu0 %v54
    %323 = vmatpush.msra.mxu0 %v53
    %324 = vmatpush.msra.mxu0 %v52
    %325 = vmatpush.msra.mxu0 %v51
    %326 = vmatpush.msra.mxu0 %v50
    %327 = vmatmul.f32.gmra.mxu0 %v309
    %v328 = vpop.f32.mrf.mxu0
    %v329 = vadd.f32 %v60, %v328
    %330 = vdwg.mxu0
    %v331 = vxor.u32 %v329, 2147483648
    %v332 = vmul.f32 %v331, 1.442695
    %v333 = vpow.pop %v332
    %v334 = vadd.f32 %v333, 1.0
    %v335 = vrcp.pop %v334
    %v336 = vmul.f32 %v334, %v335
    %v337 = vsub.f32 1.0, %v336
    %v338 = vmul.f32 %v335, %v337
    %v339 = vadd.f32 %v335, %v338
    %vm340 = vweird.f32 %v334
    %vm341 = vweird.f32 %v335
    %vm342 = vmor %vm340, %vm341
    %v343 = vsel %vm342, %v335, %v339
    %v344 = vand.u32 2147483647, %v334
    %vm345 = vcmp.eq.f32.partialorder %v344, 8.507059e+37
    %v346 = vand.u32 %v334, 2147483648
    %v347 = vor.u32 1.1754944e-38, %v346
    %v348 = vsel %vm345, %v347, %v343
    %v349 = vmul.f32 1.0, %v348
    %351 = vrot.lane.b32.xlu0 %v329, 32
    %v352 = vpop.permute.xlu0 %351
    %v354 = vmul.f32 %v349, %v352
    %356 = vrot.lane.b32.xlu0 %v354, 64
    %v357 = vpop.permute.xlu0 %356
    %v359 = vadd.f32 %v329, %v357
    %v360 = vtanh.pop %v359
    %v361 = vsub.f32 1.0, %v349
    %363 = vrot.lane.b32.xlu0 %v360, 96
    %v364 = vpop.permute.xlu0 %363
    %v366 = vmul.f32 %v361, %v364
    %v367 = vmul.f32 %v349, %v237
    %v368 = vadd.f32 %v366, %v367
    %v369 = vrot.slane %v98, 2
    %v371 = vrot.slane %v101, 1
    %v373 = vsel %vm106, %v369, %v371
    %v374 = vsel %vm108, %v305, 0
    %376 = vmatpush.msra.mxu0 0.0
    %377 = vmatpush.msra.mxu0 0.0
    %378 = vmatpush.msra.mxu0 0.0
    %379 = vmatpush.msra.mxu0 0.0
    %380 = vmatpush.msra.mxu0 0.0
    %381 = vmatpush.msra.mxu0 0.0
    %382 = vmatpush.msra.mxu0 0.0
    %383 = vmatpush.msra.mxu0 0.0
    %384 = vmatpush.msra.mxu0 0.0
    %385 = vmatpush.msra.mxu0 0.0
    %386 = vmatpush.msra.mxu0 0.0
    %387 = vmatpush.msra.mxu0 0.0
    %388 = vmatpush.msra.mxu0 %v49
    %389 = vmatpush.msra.mxu0 %v48
    %390 = vmatpush.msra.mxu0 %v47
    %391 = vmatpush.msra.mxu0 %v46
    %392 = vmatmul.f32.gmra.mxu0 %v374
    %v393 = vpop.f32.mrf.mxu0
    %v394 = vadd.f32 0.0, %v393
    %395 = vdwg.mxu0
    %v396 = vadd.f32 %v373, %v394
    %v397 = vxor.u32 %v396, 2147483648
    %v398 = vmul.f32 %v397, 1.442695
    %v399 = vpow.pop %v398
    %v400 = vadd.f32 %v399, 1.0
    %v401 = vrcp.pop %v400
    %v402 = vmul.f32 %v400, %v401
    %v403 = vsub.f32 1.0, %v402
    %v404 = vmul.f32 %v401, %v403
    %v405 = vadd.f32 %v401, %v404
    %vm406 = vweird.f32 %v400
    %vm407 = vweird.f32 %v401
    %vm408 = vmor %vm406, %vm407
    %v409 = vsel %vm408, %v401, %v405
    %v410 = vand.u32 2147483647, %v400
    %vm411 = vcmp.eq.f32.partialorder %v410, 8.507059e+37
    %v412 = vand.u32 %v400, 2147483648
    %v413 = vor.u32 1.1754944e-38, %v412
    %v414 = vsel %vm411, %v413, %v409
    %v415 = vmul.f32 1.0, %v414
    %417 = vrot.lane.b32.xlu0 %v396, 32
    %v418 = vpop.permute.xlu0 %417
    %v420 = vmul.f32 %v415, %v418
    %422 = vrot.lane.b32.xlu0 %v420, 64
    %v423 = vpop.permute.xlu0 %422
    %v425 = vadd.f32 %v396, %v423
    %v426 = vtanh.pop %v425
    %v427 = vsub.f32 1.0, %v415
    %429 = vrot.lane.b32.xlu0 %v426, 96
    %v430 = vpop.permute.xlu0 %429
    %v432 = vmul.f32 %v427, %v430
    %v433 = vmul.f32 %v415, %v302
    %v434 = vadd.f32 %v432, %v433
    %436 = vrot.lane.b32.xlu0 %v434, 96
    %v437 = vpop.permute.xlu0 %436
    %v439 = vsel %vm108, %v437, %v368
    %v441 = vsel %vm176, %v439, 0
    %443 = vmatpush.msra.mxu0 0.0
    %444 = vmatpush.msra.mxu0 0.0
    %445 = vmatpush.msra.mxu0 0.0
    %446 = vmatpush.msra.mxu0 0.0
    %447 = vmatpush.msra.mxu0 0.0
    %448 = vmatpush.msra.mxu0 0.0
    %449 = vmatpush.msra.mxu0 0.0
    %450 = vmatpush.msra.mxu0 0.0
    %451 = vmatpush.msra.mxu0 %v57
    %452 = vmatpush.msra.mxu0 %v56
    %453 = vmatpush.msra.mxu0 %v55
    %454 = vmatpush.msra.mxu0 %v54
    %455 = vmatpush.msra.mxu0 %v53
    %456 = vmatpush.msra.mxu0 %v52
    %457 = vmatpush.msra.mxu0 %v51
    %458 = vmatpush.msra.mxu0 %v50
    %459 = vmatmul.f32.gmra.mxu0 %v441
    %v460 = vpop.f32.mrf.mxu0
    %v461 = vadd.f32 %v60, %v460
    %462 = vdwg.mxu0
    %v463 = vxor.u32 %v461, 2147483648
    %v464 = vmul.f32 %v463, 1.442695
    %v465 = vpow.pop %v464
    %v466 = vadd.f32 %v465, 1.0
    %v467 = vrcp.pop %v466
    %v468 = vmul.f32 %v466, %v467
    %v469 = vsub.f32 1.0, %v468
    %v470 = vmul.f32 %v467, %v469
    %v471 = vadd.f32 %v467, %v470
    %vm472 = vweird.f32 %v466
    %vm473 = vweird.f32 %v467
    %vm474 = vmor %vm472, %vm473
    %v475 = vsel %vm474, %v467, %v471
    %v476 = vand.u32 2147483647, %v466
    %vm477 = vcmp.eq.f32.partialorder %v476, 8.507059e+37
    %v478 = vand.u32 %v466, 2147483648
    %v479 = vor.u32 1.1754944e-38, %v478
    %v480 = vsel %vm477, %v479, %v475
    %v481 = vmul.f32 1.0, %v480
    %483 = vrot.lane.b32.xlu0 %v461, 32
    %v484 = vpop.permute.xlu0 %483
    %v486 = vmul.f32 %v481, %v484
    %488 = vrot.lane.b32.xlu0 %v486, 64
    %v489 = vpop.permute.xlu0 %488
    %v491 = vadd.f32 %v461, %v489
    %v492 = vtanh.pop %v491
    %v493 = vsub.f32 1.0, %v481
    %495 = vrot.lane.b32.xlu0 %v492, 96
    %v496 = vpop.permute.xlu0 %495
    %v498 = vmul.f32 %v493, %v496
    %v499 = vmul.f32 %v481, %v368
    %v500 = vadd.f32 %v498, %v499
    %v501 = vrot.slane %v98, 3
    %v503 = vrot.slane %v101, 2
    %v505 = vsel %vm106, %v501, %v503
    %v506 = vsel %vm108, %v437, 0
    %508 = vmatpush.msra.mxu0 0.0
    %509 = vmatpush.msra.mxu0 0.0
    %510 = vmatpush.msra.mxu0 0.0
    %511 = vmatpush.msra.mxu0 0.0
    %512 = vmatpush.msra.mxu0 0.0
    %513 = vmatpush.msra.mxu0 0.0
    %514 = vmatpush.msra.mxu0 0.0
    %515 = vmatpush.msra.mxu0 0.0
    %516 = vmatpush.msra.mxu0 0.0
    %517 = vmatpush.msra.mxu0 0.0
    %518 = vmatpush.msra.mxu0 0.0
    %519 = vmatpush.msra.mxu0 0.0
    %520 = vmatpush.msra.mxu0 %v49
    %521 = vmatpush.msra.mxu0 %v48
    %522 = vmatpush.msra.mxu0 %v47
    %523 = vmatpush.msra.mxu0 %v46
    %524 = vmatmul.f32.gmra.mxu0 %v506
    %v525 = vpop.f32.mrf.mxu0
    %v526 = vadd.f32 0.0, %v525
    %527 = vdwg.mxu0
    %v528 = vadd.f32 %v505, %v526
    %v529 = vxor.u32 %v528, 2147483648
    %v530 = vmul.f32 %v529, 1.442695
    %v531 = vpow.pop %v530
    %v532 = vadd.f32 %v531, 1.0
    %v533 = vrcp.pop %v532
    %v534 = vmul.f32 %v532, %v533
    %v535 = vsub.f32 1.0, %v534
    %v536 = vmul.f32 %v533, %v535
    %v537 = vadd.f32 %v533, %v536
    %vm538 = vweird.f32 %v532
    %vm539 = vweird.f32 %v533
    %vm540 = vmor %vm538, %vm539
    %v541 = vsel %vm540, %v533, %v537
    %v542 = vand.u32 2147483647, %v532
    %vm543 = vcmp.eq.f32.partialorder %v542, 8.507059e+37
    %v544 = vand.u32 %v532, 2147483648
    %v545 = vor.u32 1.1754944e-38, %v544
    %v546 = vsel %vm543, %v545, %v541
    %v547 = vmul.f32 1.0, %v546
    %549 = vrot.lane.b32.xlu0 %v528, 32
    %v550 = vpop.permute.xlu0 %549
    %v552 = vmul.f32 %v547, %v550
    %554 = vrot.lane.b32.xlu0 %v552, 64
    %v555 = vpop.permute.xlu0 %554
    %v557 = vadd.f32 %v528, %v555
    %v558 = vtanh.pop %v557
    %v559 = vsub.f32 1.0, %v547
    %561 = vrot.lane.b32.xlu0 %v558, 96
    %v562 = vpop.permute.xlu0 %561
    %v564 = vmul.f32 %v559, %v562
    %v565 = vmul.f32 %v547, %v434
    %v566 = vadd.f32 %v564, %v565
    %568 = vrot.lane.b32.xlu0 %v566, 96
    %v569 = vpop.permute.xlu0 %568
    %v571 = vsel %vm108, %v569, %v500
    %v573 = vsel %vm176, %v571, 0
    %575 = vmatpush.msra.mxu0 0.0
    %576 = vmatpush.msra.mxu0 0.0
    %577 = vmatpush.msra.mxu0 0.0
    %578 = vmatpush.msra.mxu0 0.0
    %579 = vmatpush.msra.mxu0 0.0
    %580 = vmatpush.msra.mxu0 0.0
    %581 = vmatpush.msra.mxu0 0.0
    %582 = vmatpush.msra.mxu0 0.0
    %583 = vmatpush.msra.mxu0 %v57
    %584 = vmatpush.msra.mxu0 %v56
    %585 = vmatpush.msra.mxu0 %v55
    %586 = vmatpush.msra.mxu0 %v54
    %587 = vmatpush.msra.mxu0 %v53
    %588 = vmatpush.msra.mxu0 %v52
    %589 = vmatpush.msra.mxu0 %v51
    %590 = vmatpush.msra.mxu0 %v50
    %591 = vmatmul.f32.gmra.mxu0 %v573
    %v592 = vpop.f32.mrf.mxu0
    %v593 = vadd.f32 %v60, %v592
    %594 = vdwg.mxu0
    %v595 = vxor.u32 %v593, 2147483648
    %v596 = vmul.f32 %v595, 1.442695
    %v597 = vpow.pop %v596
    %v598 = vadd.f32 %v597, 1.0
    %v599 = vrcp.pop %v598
    %v600 = vmul.f32 %v598, %v599
    %v601 = vsub.f32 1.0, %v600
    %v602 = vmul.f32 %v599, %v601
    %v603 = vadd.f32 %v599, %v602
    %vm604 = vweird.f32 %v598
    %vm605 = vweird.f32 %v599
    %vm606 = vmor %vm604, %vm605
    %v607 = vsel %vm606, %v599, %v603
    %v608 = vand.u32 2147483647, %v598
    %vm609 = vcmp.eq.f32.partialorder %v608, 8.507059e+37
    %v610 = vand.u32 %v598, 2147483648
    %v611 = vor.u32 1.1754944e-38, %v610
    %v612 = vsel %vm609, %v611, %v607
    %v613 = vmul.f32 1.0, %v612
    %615 = vrot.lane.b32.xlu0 %v593, 32
    %v616 = vpop.permute.xlu0 %615
    %v618 = vmul.f32 %v613, %v616
    %620 = vrot.lane.b32.xlu0 %v618, 64
    %v621 = vpop.permute.xlu0 %620
    %v623 = vadd.f32 %v593, %v621
    %v624 = vtanh.pop %v623
    %v625 = vsub.f32 1.0, %v613
    %627 = vrot.lane.b32.xlu0 %v624, 96
    %v628 = vpop.permute.xlu0 %627
    %v630 = vmul.f32 %v625, %v628
    %v631 = vmul.f32 %v613, %v500
    %v632 = vadd.f32 %v630, %v631
    %v633 = vrot.slane %v98, 4
    %v635 = vrot.slane %v101, 3
    %v637 = vsel %vm106, %v633, %v635
    %v638 = vsel %vm108, %v569, 0
    %640 = vmatpush.msra.mxu0 0.0
    %641 = vmatpush.msra.mxu0 0.0
    %642 = vmatpush.msra.mxu0 0.0
    %643 = vmatpush.msra.mxu0 0.0
    %644 = vmatpush.msra.mxu0 0.0
    %645 = vmatpush.msra.mxu0 0.0
    %646 = vmatpush.msra.mxu0 0.0
    %647 = vmatpush.msra.mxu0 0.0
    %648 = vmatpush.msra.mxu0 0.0
    %649 = vmatpush.msra.mxu0 0.0
    %650 = vmatpush.msra.mxu0 0.0
    %651 = vmatpush.msra.mxu0 0.0
    %652 = vmatpush.msra.mxu0 %v49
    %653 = vmatpush.msra.mxu0 %v48
    %654 = vmatpush.msra.mxu0 %v47
    %655 = vmatpush.msra.mxu0 %v46
    %656 = vmatmul.f32.gmra.mxu0 %v638
    %v657 = vpop.f32.mrf.mxu0
    %v658 = vadd.f32 0.0, %v657
    %659 = vdwg.mxu0
    %v660 = vadd.f32 %v637, %v658
    %v661 = vxor.u32 %v660, 2147483648
    %v662 = vmul.f32 %v661, 1.442695
    %v663 = vpow.pop %v662
    %v664 = vadd.f32 %v663, 1.0
    %v665 = vrcp.pop %v664
    %v666 = vmul.f32 %v664, %v665
    %v667 = vsub.f32 1.0, %v666
    %v668 = vmul.f32 %v665, %v667
    %v669 = vadd.f32 %v665, %v668
    %vm670 = vweird.f32 %v664
    %vm671 = vweird.f32 %v665
    %vm672 = vmor %vm670, %vm671
    %v673 = vsel %vm672, %v665, %v669
    %v674 = vand.u32 2147483647, %v664
    %vm675 = vcmp.eq.f32.partialorder %v674, 8.507059e+37
    %v676 = vand.u32 %v664, 2147483648
    %v677 = vor.u32 1.1754944e-38, %v676
    %v678 = vsel %vm675, %v677, %v673
    %v679 = vmul.f32 1.0, %v678
    %681 = vrot.lane.b32.xlu0 %v660, 32
    %v682 = vpop.permute.xlu0 %681
    %v684 = vmul.f32 %v679, %v682
    %686 = vrot.lane.b32.xlu0 %v684, 64
    %v687 = vpop.permute.xlu0 %686
    %v689 = vadd.f32 %v660, %v687
    %v690 = vtanh.pop %v689
    %v691 = vsub.f32 1.0, %v679
    %693 = vrot.lane.b32.xlu0 %v690, 96
    %v694 = vpop.permute.xlu0 %693
    %v696 = vmul.f32 %v691, %v694
    %v697 = vmul.f32 %v679, %v566
    %v698 = vadd.f32 %v696, %v697
    %700 = vrot.lane.b32.xlu0 %v698, 96
    %v701 = vpop.permute.xlu0 %700
    %v703 = vsel %vm108, %v701, %v632
    %v705 = vsel %vm176, %v703, 0
    %707 = vmatpush.msra.mxu0 0.0
    %708 = vmatpush.msra.mxu0 0.0
    %709 = vmatpush.msra.mxu0 0.0
    %710 = vmatpush.msra.mxu0 0.0
    %711 = vmatpush.msra.mxu0 0.0
    %712 = vmatpush.msra.mxu0 0.0
    %713 = vmatpush.msra.mxu0 0.0
    %714 = vmatpush.msra.mxu0 0.0
    %715 = vmatpush.msra.mxu0 %v57
    %716 = vmatpush.msra.mxu0 %v56
    %717 = vmatpush.msra.mxu0 %v55
    %718 = vmatpush.msra.mxu0 %v54
    %719 = vmatpush.msra.mxu0 %v53
    %720 = vmatpush.msra.mxu0 %v52
    %721 = vmatpush.msra.mxu0 %v51
    %722 = vmatpush.msra.mxu0 %v50
    %723 = vmatmul.f32.gmra.mxu0 %v705
    %v724 = vpop.f32.mrf.mxu0
    %v725 = vadd.f32 %v60, %v724
    %726 = vdwg.mxu0
    %v727 = vxor.u32 %v725, 2147483648
    %v728 = vmul.f32 %v727, 1.442695
    %v729 = vpow.pop %v728
    %v730 = vadd.f32 %v729, 1.0
    %v731 = vrcp.pop %v730
    %v732 = vmul.f32 %v730, %v731
    %v733 = vsub.f32 1.0, %v732
    %v734 = vmul.f32 %v731, %v733
    %v735 = vadd.f32 %v731, %v734
    %vm736 = vweird.f32 %v730
    %vm737 = vweird.f32 %v731
    %vm738 = vmor %vm736, %vm737
    %v739 = vsel %vm738, %v731, %v735
    %v740 = vand.u32 2147483647, %v730
    %vm741 = vcmp.eq.f32.partialorder %v740, 8.507059e+37
    %v742 = vand.u32 %v730, 2147483648
    %v743 = vor.u32 1.1754944e-38, %v742
    %v744 = vsel %vm741, %v743, %v739
    %v745 = vmul.f32 1.0, %v744
    %747 = vrot.lane.b32.xlu0 %v725, 32
    %v748 = vpop.permute.xlu0 %747
    %v750 = vmul.f32 %v745, %v748
    %752 = vrot.lane.b32.xlu0 %v750, 64
    %v753 = vpop.permute.xlu0 %752
    %v755 = vadd.f32 %v725, %v753
    %v756 = vtanh.pop %v755
    %v757 = vsub.f32 1.0, %v745
    %759 = vrot.lane.b32.xlu0 %v756, 96
    %v760 = vpop.permute.xlu0 %759
    %v762 = vmul.f32 %v757, %v760
    %v763 = vmul.f32 %v745, %v632
    %v764 = vadd.f32 %v762, %v763
    %v765 = vrot.slane %v98, 5
    %v767 = vrot.slane %v101, 4
    %v769 = vsel %vm106, %v765, %v767
    %v770 = vsel %vm108, %v701, 0
    %772 = vmatpush.msra.mxu0 0.0
    %773 = vmatpush.msra.mxu0 0.0
    %774 = vmatpush.msra.mxu0 0.0
    %775 = vmatpush.msra.mxu0 0.0
    %776 = vmatpush.msra.mxu0 0.0
    %777 = vmatpush.msra.mxu0 0.0
    %778 = vmatpush.msra.mxu0 0.0
    %779 = vmatpush.msra.mxu0 0.0
    %780 = vmatpush.msra.mxu0 0.0
    %781 = vmatpush.msra.mxu0 0.0
    %782 = vmatpush.msra.mxu0 0.0
    %783 = vmatpush.msra.mxu0 0.0
    %784 = vmatpush.msra.mxu0 %v49
    %785 = vmatpush.msra.mxu0 %v48
    %786 = vmatpush.msra.mxu0 %v47
    %787 = vmatpush.msra.mxu0 %v46
    %788 = vmatmul.f32.gmra.mxu0 %v770
    %v789 = vpop.f32.mrf.mxu0
    %v790 = vadd.f32 0.0, %v789
    %791 = vdwg.mxu0
    %v792 = vadd.f32 %v769, %v790
    %v793 = vxor.u32 %v792, 2147483648
    %v794 = vmul.f32 %v793, 1.442695
    %v795 = vpow.pop %v794
    %v796 = vadd.f32 %v795, 1.0
    %v797 = vrcp.pop %v796
    %v798 = vmul.f32 %v796, %v797
    %v799 = vsub.f32 1.0, %v798
    %v800 = vmul.f32 %v797, %v799
    %v801 = vadd.f32 %v797, %v800
    %vm802 = vweird.f32 %v796
    %vm803 = vweird.f32 %v797
    %vm804 = vmor %vm802, %vm803
    %v805 = vsel %vm804, %v797, %v801
    %v806 = vand.u32 2147483647, %v796
    %vm807 = vcmp.eq.f32.partialorder %v806, 8.507059e+37
    %v808 = vand.u32 %v796, 2147483648
    %v809 = vor.u32 1.1754944e-38, %v808
    %v810 = vsel %vm807, %v809, %v805
    %v811 = vmul.f32 1.0, %v810
    %813 = vrot.lane.b32.xlu0 %v792, 32
    %v814 = vpop.permute.xlu0 %813
    %v816 = vmul.f32 %v811, %v814
    %818 = vrot.lane.b32.xlu0 %v816, 64
    %v819 = vpop.permute.xlu0 %818
    %v821 = vadd.f32 %v792, %v819
    %v822 = vtanh.pop %v821
    %v823 = vsub.f32 1.0, %v811
    %825 = vrot.lane.b32.xlu0 %v822, 96
    %v826 = vpop.permute.xlu0 %825
    %v828 = vmul.f32 %v823, %v826
    %v829 = vmul.f32 %v811, %v698
    %v830 = vadd.f32 %v828, %v829
    %832 = vrot.lane.b32.xlu0 %v830, 96
    %v833 = vpop.permute.xlu0 %832
    %v835 = vsel %vm108, %v833, %v764
    %v837 = vsel %vm176, %v835, 0
    %839 = vmatpush.msra.mxu0 0.0
    %840 = vmatpush.msra.mxu0 0.0
    %841 = vmatpush.msra.mxu0 0.0
    %842 = vmatpush.msra.mxu0 0.0
    %843 = vmatpush.msra.mxu0 0.0
    %844 = vmatpush.msra.mxu0 0.0
    %845 = vmatpush.msra.mxu0 0.0
    %846 = vmatpush.msra.mxu0 0.0
    %847 = vmatpush.msra.mxu0 %v57
    %848 = vmatpush.msra.mxu0 %v56
    %849 = vmatpush.msra.mxu0 %v55
    %850 = vmatpush.msra.mxu0 %v54
    %851 = vmatpush.msra.mxu0 %v53
    %852 = vmatpush.msra.mxu0 %v52
    %853 = vmatpush.msra.mxu0 %v51
    %854 = vmatpush.msra.mxu0 %v50
    %855 = vmatmul.f32.gmra.mxu0 %v837
    %v856 = vpop.f32.mrf.mxu0
    %v857 = vadd.f32 %v60, %v856
    %858 = vdwg.mxu0
    %v859 = vxor.u32 %v857, 2147483648
    %v860 = vmul.f32 %v859, 1.442695
    %v861 = vpow.pop %v860
    %v862 = vadd.f32 %v861, 1.0
    %v863 = vrcp.pop %v862
    %v864 = vmul.f32 %v862, %v863
    %v865 = vsub.f32 1.0, %v864
    %v866 = vmul.f32 %v863, %v865
    %v867 = vadd.f32 %v863, %v866
    %vm868 = vweird.f32 %v862
    %vm869 = vweird.f32 %v863
    %vm870 = vmor %vm868, %vm869
    %v871 = vsel %vm870, %v863, %v867
    %v872 = vand.u32 2147483647, %v862
    %vm873 = vcmp.eq.f32.partialorder %v872, 8.507059e+37
    %v874 = vand.u32 %v862, 2147483648
    %v875 = vor.u32 1.1754944e-38, %v874
    %v876 = vsel %vm873, %v875, %v871
    %v877 = vmul.f32 1.0, %v876
    %879 = vrot.lane.b32.xlu0 %v857, 32
    %v880 = vpop.permute.xlu0 %879
    %v882 = vmul.f32 %v877, %v880
    %884 = vrot.lane.b32.xlu0 %v882, 64
    %v885 = vpop.permute.xlu0 %884
    %v887 = vadd.f32 %v857, %v885
    %v888 = vtanh.pop %v887
    %v889 = vsub.f32 1.0, %v877
    %891 = vrot.lane.b32.xlu0 %v888, 96
    %v892 = vpop.permute.xlu0 %891
    %v894 = vmul.f32 %v889, %v892
    %v895 = vmul.f32 %v877, %v764
    %v896 = vadd.f32 %v894, %v895
    %v897 = vrot.slane %v98, 6
    %v899 = vrot.slane %v101, 5
    %v901 = vsel %vm106, %v897, %v899
    %v902 = vsel %vm108, %v833, 0
    %904 = vmatpush.msra.mxu0 0.0
    %905 = vmatpush.msra.mxu0 0.0
    %906 = vmatpush.msra.mxu0 0.0
    %907 = vmatpush.msra.mxu0 0.0
    %908 = vmatpush.msra.mxu0 0.0
    %909 = vmatpush.msra.mxu0 0.0
    %910 = vmatpush.msra.mxu0 0.0
    %911 = vmatpush.msra.mxu0 0.0
    %912 = vmatpush.msra.mxu0 0.0
    %913 = vmatpush.msra.mxu0 0.0
    %914 = vmatpush.msra.mxu0 0.0
    %915 = vmatpush.msra.mxu0 0.0
    %916 = vmatpush.msra.mxu0 %v49
    %917 = vmatpush.msra.mxu0 %v48
    %918 = vmatpush.msra.mxu0 %v47
    %919 = vmatpush.msra.mxu0 %v46
    %920 = vmatmul.f32.gmra.mxu0 %v902
    %v921 = vpop.f32.mrf.mxu0
    %v922 = vadd.f32 0.0, %v921
    %923 = vdwg.mxu0
    %v924 = vadd.f32 %v901, %v922
    %v925 = vxor.u32 %v924, 2147483648
    %v926 = vmul.f32 %v925, 1.442695
    %v927 = vpow.pop %v926
    %v928 = vadd.f32 %v927, 1.0
    %v929 = vrcp.pop %v928
    %v930 = vmul.f32 %v928, %v929
    %v931 = vsub.f32 1.0, %v930
    %v932 = vmul.f32 %v929, %v931
    %v933 = vadd.f32 %v929, %v932
    %vm934 = vweird.f32 %v928
    %vm935 = vweird.f32 %v929
    %vm936 = vmor %vm934, %vm935
    %v937 = vsel %vm936, %v929, %v933
    %v938 = vand.u32 2147483647, %v928
    %vm939 = vcmp.eq.f32.partialorder %v938, 8.507059e+37
    %v940 = vand.u32 %v928, 2147483648
    %v941 = vor.u32 1.1754944e-38, %v940
    %v942 = vsel %vm939, %v941, %v937
    %v943 = vmul.f32 1.0, %v942
    %945 = vrot.lane.b32.xlu0 %v924, 32
    %v946 = vpop.permute.xlu0 %945
    %v948 = vmul.f32 %v943, %v946
    %950 = vrot.lane.b32.xlu0 %v948, 64
    %v951 = vpop.permute.xlu0 %950
    %v953 = vadd.f32 %v924, %v951
    %v954 = vtanh.pop %v953
    %v955 = vsub.f32 1.0, %v943
    %957 = vrot.lane.b32.xlu0 %v954, 96
    %v958 = vpop.permute.xlu0 %957
    %v960 = vmul.f32 %v955, %v958
    %v961 = vmul.f32 %v943, %v830
    %v962 = vadd.f32 %v960, %v961
    %964 = vrot.lane.b32.xlu0 %v962, 96
    %v965 = vpop.permute.xlu0 %964
    %v967 = vsel %vm108, %v965, %v896
    %v969 = vsel %vm176, %v967, 0
    %971 = vmatpush.msra.mxu0 0.0
    %972 = vmatpush.msra.mxu0 0.0
    %973 = vmatpush.msra.mxu0 0.0
    %974 = vmatpush.msra.mxu0 0.0
    %975 = vmatpush.msra.mxu0 0.0
    %976 = vmatpush.msra.mxu0 0.0
    %977 = vmatpush.msra.mxu0 0.0
    %978 = vmatpush.msra.mxu0 0.0
    %979 = vmatpush.msra.mxu0 %v57
    %980 = vmatpush.msra.mxu0 %v56
    %981 = vmatpush.msra.mxu0 %v55
    %982 = vmatpush.msra.mxu0 %v54
    %983 = vmatpush.msra.mxu0 %v53
    %984 = vmatpush.msra.mxu0 %v52
    %985 = vmatpush.msra.mxu0 %v51
    %986 = vmatpush.msra.mxu0 %v50
    %987 = vmatmul.f32.gmra.mxu0 %v969
    %v988 = vpop.f32.mrf.mxu0
    %v989 = vadd.f32 %v60, %v988
    %990 = vdwg.mxu0
    %v991 = vxor.u32 %v989, 2147483648
    %v992 = vmul.f32 %v991, 1.442695
    %v993 = vpow.pop %v992
    %v994 = vadd.f32 %v993, 1.0
    %v995 = vrcp.pop %v994
    %v996 = vmul.f32 %v994, %v995
    %v997 = vsub.f32 1.0, %v996
    %v998 = vmul.f32 %v995, %v997
    %v999 = vadd.f32 %v995, %v998
    %vm1000 = vweird.f32 %v994
    %vm1001 = vweird.f32 %v995
    %vm1002 = vmor %vm1000, %vm1001
    %v1003 = vsel %vm1002, %v995, %v999
    %v1004 = vand.u32 2147483647, %v994
    %vm1005 = vcmp.eq.f32.partialorder %v1004, 8.507059e+37
    %v1006 = vand.u32 %v994, 2147483648
    %v1007 = vor.u32 1.1754944e-38, %v1006
    %v1008 = vsel %vm1005, %v1007, %v1003
    %v1009 = vmul.f32 1.0, %v1008
    %1011 = vrot.lane.b32.xlu0 %v989, 32
    %v1012 = vpop.permute.xlu0 %1011
    %v1014 = vmul.f32 %v1009, %v1012
    %1016 = vrot.lane.b32.xlu0 %v1014, 64
    %v1017 = vpop.permute.xlu0 %1016
    %v1019 = vadd.f32 %v989, %v1017
    %v1020 = vtanh.pop %v1019
    %v1021 = vsub.f32 1.0, %v1009
    %1023 = vrot.lane.b32.xlu0 %v1020, 96
    %v1024 = vpop.permute.xlu0 %1023
    %v1026 = vmul.f32 %v1021, %v1024
    %v1027 = vmul.f32 %v1009, %v896
    %v1028 = vadd.f32 %v1026, %v1027
    %v1029 = vrot.slane %v98, 7
    %v1031 = vrot.slane %v101, 6
    %v1033 = vsel %vm106, %v1029, %v1031
    %v1034 = vsel %vm108, %v965, 0
    %1036 = vmatpush.msra.mxu0 0.0
    %1037 = vmatpush.msra.mxu0 0.0
    %1038 = vmatpush.msra.mxu0 0.0
    %1039 = vmatpush.msra.mxu0 0.0
    %1040 = vmatpush.msra.mxu0 0.0
    %1041 = vmatpush.msra.mxu0 0.0
    %1042 = vmatpush.msra.mxu0 0.0
    %1043 = vmatpush.msra.mxu0 0.0
    %1044 = vmatpush.msra.mxu0 0.0
    %1045 = vmatpush.msra.mxu0 0.0
    %1046 = vmatpush.msra.mxu0 0.0
    %1047 = vmatpush.msra.mxu0 0.0
    %1048 = vmatpush.msra.mxu0 %v49
    %1049 = vmatpush.msra.mxu0 %v48
    %1050 = vmatpush.msra.mxu0 %v47
    %1051 = vmatpush.msra.mxu0 %v46
    %1052 = vmatmul.f32.gmra.mxu0 %v1034
    %v1053 = vpop.f32.mrf.mxu0
    %v1054 = vadd.f32 0.0, %v1053
    %1055 = vdwg.mxu0
    %v1056 = vadd.f32 %v1033, %v1054
    %v1057 = vxor.u32 %v1056, 2147483648
    %v1058 = vmul.f32 %v1057, 1.442695
    %v1059 = vpow.pop %v1058
    %v1060 = vadd.f32 %v1059, 1.0
    %v1061 = vrcp.pop %v1060
    %v1062 = vmul.f32 %v1060, %v1061
    %v1063 = vsub.f32 1.0, %v1062
    %v1064 = vmul.f32 %v1061, %v1063
    %v1065 = vadd.f32 %v1061, %v1064
    %vm1066 = vweird.f32 %v1060
    %vm1067 = vweird.f32 %v1061
    %vm1068 = vmor %vm1066, %vm1067
    %v1069 = vsel %vm1068, %v1061, %v1065
    %v1070 = vand.u32 2147483647, %v1060
    %vm1071 = vcmp.eq.f32.partialorder %v1070, 8.507059e+37
    %v1072 = vand.u32 %v1060, 2147483648
    %v1073 = vor.u32 1.1754944e-38, %v1072
    %v1074 = vsel %vm1071, %v1073, %v1069
    %v1075 = vmul.f32 1.0, %v1074
    %1077 = vrot.lane.b32.xlu0 %v1056, 32
    %v1078 = vpop.permute.xlu0 %1077
    %v1080 = vmul.f32 %v1075, %v1078
    %1082 = vrot.lane.b32.xlu0 %v1080, 64
    %v1083 = vpop.permute.xlu0 %1082
    %v1085 = vadd.f32 %v1056, %v1083
    %v1086 = vtanh.pop %v1085
    %v1087 = vsub.f32 1.0, %v1075
    %1089 = vrot.lane.b32.xlu0 %v1086, 96
    %v1090 = vpop.permute.xlu0 %1089
    %v1092 = vmul.f32 %v1087, %v1090
    %v1093 = vmul.f32 %v1075, %v962
    %v1094 = vadd.f32 %v1092, %v1093
    %1096 = vrot.lane.b32.xlu0 %v1094, 96
    %v1097 = vpop.permute.xlu0 %1096
    %v1099 = vsel %vm108, %v1097, %v1028
    %v1101 = vsel %vm176, %v1099, 0
    %1103 = vmatpush.msra.mxu0 0.0
    %1104 = vmatpush.msra.mxu0 0.0
    %1105 = vmatpush.msra.mxu0 0.0
    %1106 = vmatpush.msra.mxu0 0.0
    %1107 = vmatpush.msra.mxu0 0.0
    %1108 = vmatpush.msra.mxu0 0.0
    %1109 = vmatpush.msra.mxu0 0.0
    %1110 = vmatpush.msra.mxu0 0.0
    %1111 = vmatpush.msra.mxu0 %v57
    %1112 = vmatpush.msra.mxu0 %v56
    %1113 = vmatpush.msra.mxu0 %v55
    %1114 = vmatpush.msra.mxu0 %v54
    %1115 = vmatpush.msra.mxu0 %v53
    %1116 = vmatpush.msra.mxu0 %v52
    %1117 = vmatpush.msra.mxu0 %v51
    %1118 = vmatpush.msra.mxu0 %v50
    %1119 = vmatmul.f32.gmra.mxu0 %v1101
    %v1120 = vpop.f32.mrf.mxu0
    %v1121 = vadd.f32 %v60, %v1120
    %1122 = vdwg.mxu0
    %v1123 = vxor.u32 %v1121, 2147483648
    %v1124 = vmul.f32 %v1123, 1.442695
    %v1125 = vpow.pop %v1124
    %v1126 = vadd.f32 %v1125, 1.0
    %v1127 = vrcp.pop %v1126
    %v1128 = vmul.f32 %v1126, %v1127
    %v1129 = vsub.f32 1.0, %v1128
    %v1130 = vmul.f32 %v1127, %v1129
    %v1131 = vadd.f32 %v1127, %v1130
    %vm1132 = vweird.f32 %v1126
    %vm1133 = vweird.f32 %v1127
    %vm1134 = vmor %vm1132, %vm1133
    %v1135 = vsel %vm1134, %v1127, %v1131
    %v1136 = vand.u32 2147483647, %v1126
    %vm1137 = vcmp.eq.f32.partialorder %v1136, 8.507059e+37
    %v1138 = vand.u32 %v1126, 2147483648
    %v1139 = vor.u32 1.1754944e-38, %v1138
    %v1140 = vsel %vm1137, %v1139, %v1135
    %v1141 = vmul.f32 1.0, %v1140
    %1143 = vrot.lane.b32.xlu0 %v1121, 32
    %v1144 = vpop.permute.xlu0 %1143
    %v1146 = vmul.f32 %v1141, %v1144
    %1148 = vrot.lane.b32.xlu0 %v1146, 64
    %v1149 = vpop.permute.xlu0 %1148
    %v1151 = vadd.f32 %v1121, %v1149
    %v1152 = vtanh.pop %v1151
    %v1153 = vsub.f32 1.0, %v1141
    %1155 = vrot.lane.b32.xlu0 %v1152, 96
    %v1156 = vpop.permute.xlu0 %1155
    %v1158 = vmul.f32 %v1153, %v1156
    %v1159 = vmul.f32 %v1141, %v1028
    %v1160 = vadd.f32 %v1158, %v1159
    %v1161 = vld [vmem:[%s6] sm:$0xff]
    %v1162 = vld [vmem:[%s6 + $0x8] sm:$0xff]
    %v1163 = vld [vmem:[%s6 + $0x10] sm:$0xff]
    %v1164 = vld [vmem:[%s6 + $0x18] sm:$0xff]
    %v1165 = vld [vmem:[%s7] sm:$0x1]
    %v1167 = vperm.slane %v1165, 0
    %1170 = vrot.lane.b32.xlu0 %v1160, 96
    %v1171 = vpop.permute.xlu0 %1170
    %v1172 = vsel %vm108, %v1171, 0
    %1174 = vmatpush.msra.mxu0 0.0
    %1175 = vmatpush.msra.mxu0 0.0
    %1176 = vmatpush.msra.mxu0 0.0
    %1177 = vmatpush.msra.mxu0 0.0
    %1178 = vmatpush.msra.mxu0 0.0
    %1179 = vmatpush.msra.mxu0 0.0
    %1180 = vmatpush.msra.mxu0 0.0
    %1181 = vmatpush.msra.mxu0 0.0
    %1182 = vmatpush.msra.mxu0 0.0
    %1183 = vmatpush.msra.mxu0 0.0
    %1184 = vmatpush.msra.mxu0 0.0
    %1185 = vmatpush.msra.mxu0 0.0
    %1186 = vmatpush.msra.mxu0 %v1164
    %1187 = vmatpush.msra.mxu0 %v1163
    %1188 = vmatpush.msra.mxu0 %v1162
    %1189 = vmatpush.msra.mxu0 %v1161
    %1190 = vmatmul.f32.gmra.mxu0 %v1172
    %v1191 = vpop.f32.mrf.mxu0
    %v1192 = vadd.f32 %v1167, %v1191
    %1193 = vdwg.mxu0
    %vm1194 = vcmask 33792
    %1195 = vst.msk [vmem:[#allocation5] sm:$0x3] %vm1194, %v1192
    // Predicated region
    $region38: #{tpu_custom_call.1} parent=1 // pred_check
      _
    $region39: #{tpu_custom_call.1} parent=1 // pred_check_branch
      %1197 = sbr.rel (0) target = $region41
    $region40: #{tpu_custom_call.1} parent=1 // pred_region
      %1199 = vsyncadd [#allocation4], 0
      %s1201 = sshll.u32 [#allocation5], 4
      %s1202 = int_to_ptr.vmem [resolvable:$true] %s1201
      %s1203 = sshll.u32 %s8, 4
      %s1204 = int_to_ptr.hbm [resolvable:$true] %s1203
      %1206 = dma.vmem_to_hbm [thread:$0]  %s1202, 32, %s1204, [#allocation4]
    $region41: #{tpu_custom_call.1} parent=1 // pred_fallthru
      _
    // Predicated region
    $region42: #{tpu_custom_call.1} parent=1 // pred_check
      _
    $region43: #{tpu_custom_call.1} parent=1 // pred_check_branch
      %1208 = sbr.rel (0) target = $region45
    $region44: #{tpu_custom_call.1} parent=1 // pred_region
      %1210 = dma.done [#allocation4], 32
    $region45: #{tpu_custom_call.1} parent=1 // pred_fallthru
      _
    %1211 = vsyncpa [#allocation3], 1
    %1212 = vsyncpa [#allocation4], 1

</llo_original>
